<compile_context>
chip_gen: v6e
topology: v6e:2x2x1
jax: 0.10.0
libtpu: 0.0.40
codegen_flags: <defaults>
</compile_context>

<pallas_src>
import functools

import jax
import jax.numpy as jnp
from jax import lax
from jax.experimental import pallas as pl
from jax.experimental.pallas import tpu as pltpu


def _vmem_limit_bytes():
    # ~75% of physical VMEM (v7x: 64 MiB -> 48 MiB, v6e/v5e: 128 MiB -> 96 MiB).
    try:
        cap = int(pltpu.get_tpu_info().vmem_capacity_bytes)
        return (cap * 3) // 4
    except Exception:
        return 48 * 1024 * 1024


def _pick_tile(n, preferred):
    for t in preferred:
        if t <= n and n % t == 0:
            return t
    return n


# ----------------------------------------------------------------------------
# Kernel 1: QKV projection (bf16 MXU, f32 accumulate)
# ----------------------------------------------------------------------------
def _qkv_proj_kernel(x_ref, w_ref, o_ref):
    o_ref[...] = jnp.dot(x_ref[...], w_ref[...],
                         preferred_element_type=jnp.float32).astype(o_ref.dtype)


# ----------------------------------------------------------------------------
# Kernel 2: flash attention (pre-rotated Q/K, GQA heads batched into one dot)
# ----------------------------------------------------------------------------
def _flash_attn_kernel(q_ref, k_ref, v_ref, o_ref, m_sc, l_sc, acc_sc,
                       *, block_q, block_k, group, head_dim):
    i = pl.program_id(1)          # query block
    j = pl.program_id(2)          # kv block (reduction axis, innermost)
    m_rows = group * block_q

    @pl.when(j == 0)
    def _init():
        m_sc[...] = jnp.full(m_sc.shape, -jnp.inf, dtype=m_sc.dtype)
        l_sc[...] = jnp.zeros(l_sc.shape, dtype=l_sc.dtype)
        acc_sc[...] = jnp.zeros(acc_sc.shape, dtype=acc_sc.dtype)

    def _update(masked):
        # Single large-M MXU matmul: (group*bq, D) x (bk, D)^T -> (group*bq, bk)
        q2 = q_ref[0].reshape(m_rows, head_dim)            # bf16
        k2 = k_ref[0]                                       # bf16 (bk, D)
        s = lax.dot_general(q2, k2, (((1,), (1,)), ((), ())),
                            preferred_element_type=jnp.float32)

        if masked:  # only diagonal-straddling blocks pay the mask cost
            qpos = i * block_q + lax.broadcasted_iota(
                jnp.int32, (block_q, block_k), 0)
            kpos = j * block_k + lax.broadcasted_iota(
                jnp.int32, (block_q, block_k), 1)
            mask = qpos >= kpos
            s = jnp.where(mask[None], s.reshape(group, block_q, block_k),
                          -1e30).reshape(m_rows, block_k)

        m_prev = m_sc[...]
        m_new = jnp.maximum(m_prev, jnp.max(s, axis=-1, keepdims=True))
        alpha = jnp.exp(m_prev - m_new)
        p = jnp.exp(s - m_new)                              # f32 softmax math
        l_sc[...] = alpha * l_sc[...] + jnp.sum(p, axis=-1, keepdims=True)
        acc_sc[...] = alpha * acc_sc[...] + jnp.dot(
            p.astype(jnp.bfloat16), v_ref[0],
            preferred_element_type=jnp.float32)
        m_sc[...] = m_new

    # Diagonal-straddling blocks: masked update.
    @pl.when((j * block_k < (i + 1) * block_q) &
             ((j + 1) * block_k > i * block_q))
    def _diag():
        _update(masked=True)

    # Fully-below-diagonal blocks: unmasked update (no iota/compare/select).
    @pl.when((j + 1) * block_k <= i * block_q)
    def _interior():
        _update(masked=False)

    @pl.when(j == pl.num_programs(2) - 1)
    def _finalize():
        inv_l = pl.reciprocal(l_sc[...], approx=True)
        o_ref[0] = (acc_sc[...] * inv_l).reshape(
            group, block_q, head_dim).astype(o_ref.dtype)


# ----------------------------------------------------------------------------
# Kernel 3: output projection, accumulated per head (reduction grid axis)
# ----------------------------------------------------------------------------
def _o_proj_kernel(a_ref, w_ref, o_ref, acc_sc, *, resident_w):
    h = pl.program_id(1)

    @pl.when(h == 0)
    def _():
        acc_sc[...] = jnp.zeros(acc_sc.shape, dtype=acc_sc.dtype)

    w = w_ref[h] if resident_w else w_ref[0]
    acc_sc[...] += jnp.dot(a_ref[0], w, preferred_element_type=jnp.float32)

    @pl.when(h == pl.num_programs(1) - 1)
    def _():
        o_ref[...] = acc_sc[...].astype(o_ref.dtype)


# ----------------------------------------------------------------------------
# Wrapper
# ----------------------------------------------------------------------------
def gemma_attention(hidden_states, positions, w_qkv, w_o, *,
                    num_heads, num_kv_heads, head_dim, rope_theta=10000.0):
    T, hidden = hidden_states.shape
    assert num_heads % num_kv_heads == 0
    group = num_heads // num_kv_heads
    q_size = num_heads * head_dim
    kv_size = num_kv_heads * head_dim
    qkv_total = q_size + 2 * kv_size
    scaling = float(head_dim) ** -0.5
    out_dtype = hidden_states.dtype
    vmem_limit = _vmem_limit_bytes()

    # ---- glue: bf16 activations/weights; 1/sqrt(D) folded into Q columns ----
    x_b = hidden_states.astype(jnp.bfloat16)
    col_scale = jnp.concatenate([
        jnp.full((q_size,), scaling, jnp.float32),
        jnp.ones((2 * kv_size,), jnp.float32)])
    w_qkv_b = (w_qkv.astype(jnp.float32) * col_scale[None, :]).astype(jnp.bfloat16)
    w_o_b = w_o.astype(jnp.bfloat16).reshape(num_heads, head_dim, hidden)

    # ---- tile sizes ----------------------------------------------------------
    bt = _pick_tile(T, (512, 256, 128, 64, 32, 16, 8))
    bn = _pick_tile(qkv_total, (512, 256, 128))
    q_pref = (256, 128, 64, 32, 16, 8) if group == 1 else (128, 256, 64, 32, 16, 8)
    bq = _pick_tile(T, q_pref)
    bk = _pick_tile(T, (256, 128, 64, 32, 16, 8))

    # ---- Kernel 1: QKV projection -------------------------------------------
    qkv = pl.pallas_call(
        _qkv_proj_kernel,
        out_shape=jax.ShapeDtypeStruct((T, qkv_total), jnp.bfloat16),
        grid_spec=pltpu.PrefetchScalarGridSpec(
            num_scalar_prefetch=0,
            grid=(T // bt, qkv_total // bn),
            in_specs=[pl.BlockSpec((bt, hidden), lambda t, n: (t, 0)),
                      pl.BlockSpec((hidden, bn), lambda t, n: (0, n))],
            out_specs=pl.BlockSpec((bt, bn), lambda t, n: (t, n))),
        compiler_params=pltpu.CompilerParams(
            dimension_semantics=("parallel", "parallel"),
            vmem_limit_bytes=vmem_limit),
    )(x_b, w_qkv_b)

    # ---- glue: neox RoPE (once) fused with the head-major transpose ---------
    half = head_dim // 2
    inv_freq = 1.0 / (rope_theta ** (
        jnp.arange(0, half, dtype=jnp.float32) / half))
    ang = positions.astype(jnp.float32)[:, None] * inv_freq[None, :]   # [T, d/2]
    cos = jnp.cos(ang)[:, None, :]
    sin = jnp.sin(ang)[:, None, :]

    def _rope(x):                            # x: [T, H, D] float32
        x1, x2 = x[..., :half], x[..., half:]
        return jnp.concatenate([x1 * cos - x2 * sin,
                                x2 * cos + x1 * sin], axis=-1)

    q = qkv[:, :q_size].astype(jnp.float32).reshape(T, num_heads, head_dim)
    q = _rope(q).astype(jnp.bfloat16)
    q = q.reshape(T, num_kv_heads, group, head_dim).transpose(1, 2, 0, 3)
    k = qkv[:, q_size:q_size + kv_size].astype(jnp.float32).reshape(
        T, num_kv_heads, head_dim)
    k = _rope(k).astype(jnp.bfloat16).transpose(1, 0, 2)
    v = qkv[:, q_size + kv_size:].reshape(T, num_kv_heads, head_dim)
    v = v.transpose(1, 0, 2)

    nq, nk = T // bq, T // bk

    def kv_block(i, j):
        # Clamp to the last causally-needed KV block: skipped (fully masked)
        # steps re-use the previous block index -> no extra K/V DMA.
        return jnp.minimum(j, ((i + 1) * bq - 1) // bk)

    # ---- Kernel 2: flash attention ------------------------------------------
    attn = pl.pallas_call(
        functools.partial(_flash_attn_kernel, block_q=bq, block_k=bk,
                          group=group, head_dim=head_dim),
        out_shape=jax.ShapeDtypeStruct((num_kv_heads, group, T, head_dim),
                                       jnp.bfloat16),
        grid_spec=pltpu.PrefetchScalarGridSpec(
            num_scalar_prefetch=0,
            grid=(num_kv_heads, nq, nk),
            in_specs=[
                pl.BlockSpec((1, group, bq, head_dim),
                             lambda h, i, j: (h, 0, i, 0)),
                pl.BlockSpec((1, bk, head_dim),
                             lambda h, i, j: (h, kv_block(i, j), 0)),
                pl.BlockSpec((1, bk, head_dim),
                             lambda h, i, j: (h, kv_block(i, j), 0)),
            ],
            out_specs=pl.BlockSpec((1, group, bq, head_dim),
                                   lambda h, i, j: (h, 0, i, 0)),
            scratch_shapes=[
                pltpu.VMEM((group * bq, 1), jnp.float32),          # running max
                pltpu.VMEM((group * bq, 1), jnp.float32),          # running sum
                pltpu.VMEM((group * bq, head_dim), jnp.float32),   # accumulator
            ]),
        compiler_params=pltpu.CompilerParams(
            dimension_semantics=("parallel", "parallel", "arbitrary"),
            vmem_limit_bytes=vmem_limit),
    )(q, k, v)

    # ---- Kernel 3: output projection ----------------------------------------
    attn_heads = attn.reshape(num_heads, T, head_dim)   # leading-dim merge only
    bt3 = _pick_tile(T, (512, 256, 128, 64, 32, 16, 8))
    resident_w = (num_heads * head_dim * hidden * 2) <= (12 * 1024 * 1024)
    if resident_w:
        w_spec = pl.BlockSpec((num_heads, head_dim, hidden),
                              lambda t, h: (0, 0, 0))    # loaded into VMEM once
    else:
        w_spec = pl.BlockSpec((1, head_dim, hidden), lambda t, h: (h, 0, 0))

    out = pl.pallas_call(
        functools.partial(_o_proj_kernel, resident_w=resident_w),
        out_shape=jax.ShapeDtypeStruct((T, hidden), out_dtype),
        grid_spec=pltpu.PrefetchScalarGridSpec(
            num_scalar_prefetch=0,
            grid=(T // bt3, num_heads),
            in_specs=[pl.BlockSpec((1, bt3, head_dim), lambda t, h: (h, t, 0)),
                      w_spec],
            out_specs=pl.BlockSpec((bt3, hidden), lambda t, h: (t, 0)),
            scratch_shapes=[pltpu.VMEM((bt3, hidden), jnp.float32)]),
        compiler_params=pltpu.CompilerParams(
            dimension_semantics=("parallel", "arbitrary"),
            vmem_limit_bytes=vmem_limit),
    )(attn_heads, w_o_b)

    return out


# ----------------------------------------------------------------------------
# Pure-JAX f32 reference (for the correctness check in __main__)
# ----------------------------------------------------------------------------
def _reference(hidden_states, positions, w_qkv, w_o, *, num_heads,
               num_kv_heads, head_dim, rope_theta):
    T, _ = hidden_states.shape
    group = num_heads // num_kv_heads
    q_size = num_heads * head_dim
    kv_size = num_kv_heads * head_dim
    half = head_dim // 2
    scaling = float(head_dim) ** -0.5

    qkv = hidden_states @ w_qkv
    q = qkv[:, :q_size].reshape(T, num_heads, head_dim)
    k = qkv[:, q_size:q_size + kv_size].reshape(T, num_kv_heads, head_dim)
    v = qkv[:, q_size + kv_size:].reshape(T, num_kv_heads, head_dim)

    inv_freq = 1.0 / (rope_theta ** (
        jnp.arange(0, half, dtype=jnp.float32) / half))
    ang = positions.astype(jnp.float32)[:, None] * inv_freq[None, :]
    cos = jnp.cos(ang)[:, None, :]
    sin = jnp.sin(ang)[:, None, :]

    def rope(x):
        x1, x2 = x[..., :half], x[..., half:]
        return jnp.concatenate([x1 * cos - x2 * sin, x2 * cos + x1 * sin], -1)

    q, k = rope(q), rope(k)
    kk = jnp.repeat(k, group, axis=1)
    vv = jnp.repeat(v, group, axis=1)
    s = jnp.einsum('qhd,khd->hqk', q, kk) * scaling
    mask = jnp.tril(jnp.ones((T, T), bool))
    s = jnp.where(mask[None], s, -jnp.inf)
    p = jax.nn.softmax(s, axis=-1)
    o = jnp.einsum('hqk,khd->qhd', p, vv).reshape(T, q_size)
    return o @ w_o


if __name__ == "__main__":
    # Small, module-consistent shapes (lane-aligned head_dim, GQA group = 2).
    T = 256
    hidden_size = 256
    num_heads = 4
    num_kv_heads = 2
    head_dim = 128
    q_size = num_heads * head_dim
    kv_size = num_kv_heads * head_dim

    key = jax.random.PRNGKey(0)
    k1, k2, k3 = jax.random.split(key, 3)

    hidden_states = jax.random.normal(k1, (T, hidden_size), dtype=jnp.float32)
    positions = jnp.arange(T, dtype=jnp.int32)

    # qkv_proj weight: [hidden, q_size + 2*kv_size]; o_proj weight: [q_size, hidden]
    w_qkv = 0.02 * jax.random.normal(k2, (hidden_size, q_size + 2 * kv_size),
                                     dtype=jnp.float32)
    w_o = 0.02 * jax.random.normal(k3, (q_size, hidden_size), dtype=jnp.float32)

    out = gemma_attention(hidden_states, positions, w_qkv, w_o,
                          num_heads=num_heads, num_kv_heads=num_kv_heads,
                          head_dim=head_dim, rope_theta=10000.0)
    jax.block_until_ready(out)

    assert out.shape == (T, hidden_size)
    assert bool(jnp.all(jnp.isfinite(out)))

    ref = _reference(hidden_states, positions, w_qkv, w_o,
                     num_heads=num_heads, num_kv_heads=num_kv_heads,
                     head_dim=head_dim, rope_theta=10000.0)
    max_err = float(jnp.max(jnp.abs(out.astype(jnp.float32) - ref)))
    assert max_err < 5e-2, f"max abs error vs f32 reference too large: {max_err}"

    print("KERNEL_OK")
</pallas_src>

<mosaic_0001>
module attributes {stable_mosaic.version = 11 : i64} {
  func.func @_qkv_proj_kernel(%arg0: i32, %arg1: i32, %arg2: memref<256x256xbf16, #tpu.memory_space<vmem>>, %arg3: memref<256x512xbf16, #tpu.memory_space<vmem>>, %arg4: memref<256x512xbf16, #tpu.memory_space<vmem>>) attributes {dimension_semantics = [#tpu.dimension_semantics<parallel>, #tpu.dimension_semantics<parallel>], iteration_bounds = array<i64: 1, 2>, scalar_prefetch = 0 : i64, scratch_operands = 0 : i64, tpu.core_type = #tpu.core_type<tc>, window_params = [{transform_indices = @transform_0, window_bounds = array<i64: 256, 256>}, {transform_indices = @transform_1, window_bounds = array<i64: 256, 512>}, {transform_indices = @transform_2, window_bounds = array<i64: 256, 512>}]} {
    %c0 = arith.constant 0 : index
    %c0_0 = arith.constant 0 : index
    %0 = vector.load %arg2[%c0, %c0_0] : memref<256x256xbf16, #tpu.memory_space<vmem>>, vector<256x256xbf16>
    %c0_1 = arith.constant 0 : index
    %c0_2 = arith.constant 0 : index
    %1 = vector.load %arg3[%c0_1, %c0_2] : memref<256x512xbf16, #tpu.memory_space<vmem>>, vector<256x512xbf16>
    %cst = arith.constant dense<0.000000e+00> : vector<256x512xf32>
    %2 = tpu.matmul %0, %1, %cst {dimension_numbers = #tpu.dot_dimension_numbers<[1], [0], [0], [1], [0, 0, 1, 1], [], []>} : vector<256x256xbf16>, vector<256x512xbf16>, vector<256x512xf32> -> vector<256x512xf32>
    %3 = arith.truncf %2 : vector<256x512xf32> to vector<256x512xbf16>
    %c0_3 = arith.constant 0 : index
    %c0_4 = arith.constant 0 : index
    %4 = vector.load %arg4[%c0_3, %c0_4] : memref<256x512xbf16, #tpu.memory_space<vmem>>, vector<256x512xbf16>
    tpu.vector_store %arg4[%c0_3, %c0_4], %3 {strides = array<i32>} : memref<256x512xbf16, #tpu.memory_space<vmem>>, vector<256x512xbf16>,
    return
  }
  func.func @transform_0(%arg0: i32, %arg1: i32) -> (i32, i32) {
    %c0_i32 = arith.constant 0 : i32
    %c0_i32_0 = arith.constant 0 : i32
    return %arg0, %c0_i32 : i32, i32
  }
  func.func @transform_1(%arg0: i32, %arg1: i32) -> (i32, i32) {
    %c0_i32 = arith.constant 0 : i32
    %c0_i32_0 = arith.constant 0 : i32
    return %c0_i32, %arg1 : i32, i32
  }
  func.func @transform_2(%arg0: i32, %arg1: i32) -> (i32, i32) {
    %c0_i32 = arith.constant 0 : i32
    return %arg0, %arg1 : i32, i32
  }
}

</mosaic_0001>

<llo_original>
// kernel: tpu_custom_call.1
$region0: #{tpu_custom_call.1}
  #allocation0 [shape = 'u32[]', space=smem, size = 0x4, offset = 0x4, fixed_abs, tag = 'smem constant byte address 0x4 - core index']
  #allocation1 [shape = 'u32[144,128]{1,0:T(1,128)}', space=vmem, size = 0x12000, scoped, tag = 'internal scratch']
  %s0 = inlined_call_operand.hbm [shape: bf16[256,256], index: 0, kind: input, shape index: {}]
  %s1 = inlined_call_operand.hbm [shape: bf16[256,1024], index: 1, kind: input, shape index: {}]
  %s2 = inlined_call_operand.hbm [shape: bf16[256,1024], index: 2, kind: output, shape index: {}]
  %s3 = sld [smem:[#allocation0]]
  $region49: #{tpu_custom_call.1} parent=0
    _
  %s5 = ssub.s32 1, %s3
  %s6 = scalar_select 0, %s5, %s3
  $region1: #{tpu_custom_call.1} parent=0
    #allocation2 [shape = 'u8[131072]{0}', space=vmem, size = 0x20000, scoped, tag = 'input window, operand 0, single buffered']
    #allocation3 [shape = 's32[2]{0}', space=sflag, size = 0x8, scoped, tag = 'scoped memory for tpu_custom_call.1']
    #allocation4 [shape = 's32[2]{0}', space=sflag, size = 0x8, scoped, tag = 'scoped memory for tpu_custom_call.1']
    #allocation5 [shape = 'u8[524288]{0}', space=vmem, size = 0x80000, scoped, tag = 'input window, operand 1']
    #allocation6 [shape = 's32[2]{0}', space=sflag, size = 0x8, scoped, tag = 'scoped memory for tpu_custom_call.1']
    #allocation7 [shape = 'u8[524288]{0}', space=vmem, size = 0x80000, scoped, tag = 'output window, operand 0']
    %7 = vsyncpa [#allocation3], 0
    %8 = vsyncpa [#allocation6], 0
    %s9 = scalar_lea.sflag [#allocation6], 1
    %10 = vsyncpa %s9, 0
    %11 = vsyncpa [#allocation4], 0
    %s12 = scalar_lea.sflag [#allocation4], 1
    %13 = vsyncpa %s12, 0
    loop: start=0, step=1, limit=4
    $region2: #{tpu_custom_call.1} parent=1 // loop_pre_header
      _
    $region3: #{tpu_custom_call.1} parent=1 // loop_header
      %s15 = sphi 0, %s19
      %p16 = scmp.ge.s32.totalorder %s15, 4
      %s22 = sphi 0, %s34
      %s23 = sphi 0, %s30
      %s24 = sphi 0, %s22
      %s25 = sphi 0, %s23
      %s26 = sphi 0, %s24
      %s27 = sphi 0, %s25
      %s37 = sphi 0, %s39
      %s40 = sphi 0, %s37
      %s41 = sphi 0, %s40
      %s57 = sphi 0, %s41
      %s63 = sphi 0, %s65
      %s66 = sphi 0, %s63
      %s67 = sphi 0, %s66
      %s83 = sphi 0, %s67
      %s91 = sphi 0, %s93
      %s94 = sphi 0, %s91
      %s95 = sphi 0, %s94
      %s111 = sphi 0, %s95
    $region4: #{tpu_custom_call.1} parent=1 // loop_header_branch
      %18 = sbr.rel (%p16) target = $region8
    $region5: #{tpu_custom_call.1} parent=1 // loop_body
      %s20 = ssub.s32 %s15, 1
      %s21 = ssub.s32 %s15, 2
      %s28 = sadd.s32 1, %s23
      %p29 = scmp.ge.s32.totalorder %s28, 2
      %s30 = scalar_select %p29, 0, %s28
      %s31 = sadd.s32 1, %s22
      %s32 = scalar_select %p29, %s31, %s22
      %p33 = scmp.ge.s32.totalorder %s32, 1
      %s34 = scalar_select %p33, 0, %s32
      %s35 = ssub.s32 %s22, %s34
      %p36 = scmp.eq.s32.totalorder %s35, 0
      %s38 = sadd.s32 %s37, 1
      %s39 = scalar_select %p36, %s37, %s38
      %p42 = pneg %p36
      %p43 = scmp.eq.s32.totalorder %s15, 1
      %p44 = por %p42, %p43
      %p45 = scmp.ne.s32.totalorder %s37, %s40
      %p46 = scmp.eq.s32.totalorder %s15, 0
      %p47 = por %p45, %p46
      %p48 = scmp.ne.s32.totalorder %s37, %s40
      %p49 = scmp.eq.s32.totalorder %s20, 1
      %p50 = por %p48, %p49
      %p51 = scmp.ne.s32.totalorder %s40, %s41
      %p52 = scmp.eq.s32.totalorder %s20, 0
      %p53 = por %p51, %p52
      %p54 = scmp.ne.s32.totalorder %s40, %s41
      %p55 = scmp.eq.s32.totalorder %s21, 1
      %p56 = por %p54, %p55
      %p58 = scmp.ne.s32.totalorder %s41, %s57
      %p59 = scmp.eq.s32.totalorder %s21, 0
      %p60 = por %p58, %p59
      %s61 = ssub.s32 %s23, %s30
      %p62 = scmp.eq.s32.totalorder %s61, 0
      %s64 = sadd.s32 %s63, 1
      %s65 = scalar_select %p62, %s63, %s64
      %p68 = pneg %p62
      %p69 = scmp.eq.s32.totalorder %s15, 1
      %p70 = por %p68, %p69
      %p71 = scmp.ne.s32.totalorder %s63, %s66
      %p72 = scmp.eq.s32.totalorder %s15, 0
      %p73 = por %p71, %p72
      %p74 = scmp.ne.s32.totalorder %s63, %s66
      %p75 = scmp.eq.s32.totalorder %s20, 1
      %p76 = por %p74, %p75
      %p77 = scmp.ne.s32.totalorder %s66, %s67
      %p78 = scmp.eq.s32.totalorder %s20, 0
      %p79 = por %p77, %p78
      %p80 = scmp.ne.s32.totalorder %s66, %s67
      %p81 = scmp.eq.s32.totalorder %s21, 1
      %p82 = por %p80, %p81
      %p84 = scmp.ne.s32.totalorder %s67, %s83
      %p85 = scmp.eq.s32.totalorder %s21, 0
      %p86 = por %p84, %p85
      %s87 = ssub.s32 %s22, %s34
      %s88 = ssub.s32 %s23, %s30
      %s89 = sor.u32 %s87, %s88
      %p90 = scmp.eq.s32.totalorder %s89, 0
      %s92 = sadd.s32 %s91, 1
      %s93 = scalar_select %p90, %s91, %s92
      %p96 = pneg %p90
      %p97 = scmp.eq.s32.totalorder %s15, 1
      %p98 = por %p96, %p97
      %p99 = scmp.ne.s32.totalorder %s91, %s94
      %p100 = scmp.eq.s32.totalorder %s15, 0
      %p101 = por %p99, %p100
      %p102 = scmp.ne.s32.totalorder %s91, %s94
      %p103 = scmp.eq.s32.totalorder %s20, 1
      %p104 = por %p102, %p103
      %p105 = scmp.ne.s32.totalorder %s94, %s95
      %p106 = scmp.eq.s32.totalorder %s20, 0
      %p107 = por %p105, %p106
      %p108 = scmp.ne.s32.totalorder %s94, %s95
      %p109 = scmp.eq.s32.totalorder %s21, 1
      %p110 = por %p108, %p109
      %p112 = scmp.ne.s32.totalorder %s95, %s111
      %p113 = scmp.eq.s32.totalorder %s21, 0
      %p114 = por %p112, %p113
      %p115 = scmp.le.s32.totalorder 1, %s15
      %p116 = scmp.lt.s32.totalorder %s15, 3
      %p117 = pnand %p115, %p116
      %p118 = pneg %p117
      // Predicated region
      $region9: #{tpu_custom_call.1} parent=5 // pred_check
        _
      $region10: #{tpu_custom_call.1} parent=5 // pred_check_branch
        %120 = sbr.rel (%p117) target = $region12
      $region11: #{tpu_custom_call.1} parent=5 // pred_region
        %s121 = ssub.s32 %s15, 1
        // Predicated region
        $region13: #{tpu_custom_call.1} parent=11 // pred_check
          %p122 = pneg %p53
        $region14: #{tpu_custom_call.1} parent=11 // pred_check_branch
          %124 = sbr.rel (%p122) target = $region16
        $region15: #{tpu_custom_call.1} parent=11 // pred_region
          %s125 = smul.u32 32, %s24
          %s127 = ssub.s32 4096, 4096
          %128 = vsyncadd [#allocation3], %s127
          %s129 = smul.addr %s125, 2
          %s130 = smul.addr %s129, 64
          %s131 = scalar_lea.hbm %s0, %s130
          %s132 = sshll.u32 [#allocation2], 4
          %s133 = int_to_ptr.vmem [resolvable:$true] %s132
          %138 = dma.hbm_to_vmem [thread:$0]  %s131, 4096, %s133, [#allocation3], 128, 128, 8
        $region16: #{tpu_custom_call.1} parent=11 // pred_fallthru
          _
      $region12: #{tpu_custom_call.1} parent=5 // pred_fallthru
        _
      %p139 = scmp.lt.s32.totalorder %s15, 2
      // Predicated region
      $region17: #{tpu_custom_call.1} parent=5 // pred_check
        %p140 = pneg %p139
      $region18: #{tpu_custom_call.1} parent=5 // pred_check_branch
        %142 = sbr.rel (%p140) target = $region20
      $region19: #{tpu_custom_call.1} parent=5 // pred_region
        // Predicated region
        $region21: #{tpu_custom_call.1} parent=19 // pred_check
          %p143 = pneg %p73
        $region22: #{tpu_custom_call.1} parent=19 // pred_check_branch
          %145 = sbr.rel (%p143) target = $region24
        $region23: #{tpu_custom_call.1} parent=19 // pred_region
          %s146 = sand.u32 %s63, 1
          %s147 = scalar_lea.sflag [#allocation6], %s146
          %s148 = sand.u32 %s63, 1
          %s149 = smul.addr %s148, 512
          %s150 = scalar_lea.vmem [#allocation5], %s149
          %s151 = smul.u32 4, %s23
          %s153 = ssub.s32 8192, 8192
          %154 = vsyncadd %s147, %s153
          %s155 = smul.addr %s151, 64
          %s156 = scalar_lea.hbm %s1, %s155
          %s157 = sshll.u32 %s150, 4
          %s158 = int_to_ptr.vmem [resolvable:$true] %s157
          %163 = dma.hbm_to_vmem [thread:$0]  %s156, 8192, %s158, %s147, 512, 256, 16
        $region24: #{tpu_custom_call.1} parent=19 // pred_fallthru
          _
      $region20: #{tpu_custom_call.1} parent=5 // pred_fallthru
        _
      %p164 = scmp.le.s32.totalorder 1, %s15
      %p165 = scmp.lt.s32.totalorder %s15, 3
      %p166 = pnand %p164, %p165
      %p167 = pneg %p166
      // Predicated region
      $region25: #{tpu_custom_call.1} parent=5 // pred_check
        _
      $region26: #{tpu_custom_call.1} parent=5 // pred_check_branch
        %169 = sbr.rel (%p166) target = $region28
      $region27: #{tpu_custom_call.1} parent=5 // pred_region
        %s170 = ssub.s32 %s15, 1
        // Predicated region
        $region29: #{tpu_custom_call.1} parent=27 // pred_check
          %p171 = pneg %p53
        $region30: #{tpu_custom_call.1} parent=27 // pred_check_branch
          %173 = sbr.rel (%p171) target = $region32
        $region31: #{tpu_custom_call.1} parent=27 // pred_region
          %174 = dma.done [#allocation3], 4096
        $region32: #{tpu_custom_call.1} parent=27 // pred_fallthru
          _
        %s175 = sand.u32 %s66, 1
        %s176 = scalar_lea.sflag [#allocation6], %s175
        %s177 = sand.u32 %s66, 1
        %s178 = smul.addr %s177, 512
        %s179 = scalar_lea.vmem [#allocation5], %s178
        // Predicated region
        $region33: #{tpu_custom_call.1} parent=27 // pred_check
          %p180 = pneg %p79
        $region34: #{tpu_custom_call.1} parent=27 // pred_check_branch
          %182 = sbr.rel (%p180) target = $region36
        $region35: #{tpu_custom_call.1} parent=27 // pred_region
          %183 = dma.done %s176, 8192
        $region36: #{tpu_custom_call.1} parent=27 // pred_fallthru
          _
        %p184 = pneg %p53
        %p185 = pneg %p50
        %s186 = sand.u32 %s66, 1
        %s187 = scalar_lea.sflag [#allocation6], %s186
        %s188 = sand.u32 %s66, 1
        %s189 = smul.addr %s188, 512
        %s190 = scalar_lea.vmem [#allocation5], %s189
        %p191 = pneg %p79
        %p192 = pneg %p76
        %p193 = pneg %p107
        %p194 = pneg %p104
        %s195 = sand.u32 %s94, 1
        %s196 = scalar_lea.sflag [#allocation4], %s195
        %s197 = sand.u32 %s94, 1
        %s198 = smul.addr %s197, 512
        %s199 = scalar_lea.vmem [#allocation7], %s198
        %s200 = smul.u32 32, %s24
        %s201 = smul.u32 4, %s25
        %s202 = smul.u32 32, %s24
        %s203 = smul.u32 4, %s25
        %v204 = vld [vmem:[#allocation2] sm:$0xff]
        %v205 = vld [vmem:[#allocation2 + $0x8] sm:$0xff]
        %v206 = vld [vmem:[#allocation2 + $0x10] sm:$0xff]
        %v207 = vld [vmem:[#allocation2 + $0x18] sm:$0xff]
        %v208 = vld [vmem:[#allocation2 + $0x20] sm:$0xff]
        %v209 = vld [vmem:[#allocation2 + $0x28] sm:$0xff]
        %v210 = vld [vmem:[#allocation2 + $0x30] sm:$0xff]
        %v211 = vld [vmem:[#allocation2 + $0x38] sm:$0xff]
        %v212 = vld [vmem:[#allocation2 + $0x40] sm:$0xff]
        %v213 = vld [vmem:[#allocation2 + $0x48] sm:$0xff]
        %v214 = vld [vmem:[#allocation2 + $0x50] sm:$0xff]
        %v215 = vld [vmem:[#allocation2 + $0x58] sm:$0xff]
        %v216 = vld [vmem:[#allocation2 + $0x60] sm:$0xff]
        %v217 = vld [vmem:[#allocation2 + $0x68] sm:$0xff]
        %v218 = vld [vmem:[#allocation2 + $0x70] sm:$0xff]
        %v219 = vld [vmem:[#allocation2 + $0x78] sm:$0xff]
        %v220 = vld [vmem:[#allocation2 + $0x80] sm:$0xff]
        %v221 = vld [vmem:[#allocation2 + $0x88] sm:$0xff]
        %v222 = vld [vmem:[#allocation2 + $0x90] sm:$0xff]
        %v223 = vld [vmem:[#allocation2 + $0x98] sm:$0xff]
        %v224 = vld [vmem:[#allocation2 + $0xa0] sm:$0xff]
        %v225 = vld [vmem:[#allocation2 + $0xa8] sm:$0xff]
        %v226 = vld [vmem:[#allocation2 + $0xb0] sm:$0xff]
        %v227 = vld [vmem:[#allocation2 + $0xb8] sm:$0xff]
        %v228 = vld [vmem:[#allocation2 + $0xc0] sm:$0xff]
        %v229 = vld [vmem:[#allocation2 + $0xc8] sm:$0xff]
        %v230 = vld [vmem:[#allocation2 + $0xd0] sm:$0xff]
        %v231 = vld [vmem:[#allocation2 + $0xd8] sm:$0xff]
        %v232 = vld [vmem:[#allocation2 + $0xe0] sm:$0xff]
        %v233 = vld [vmem:[#allocation2 + $0xe8] sm:$0xff]
        %v234 = vld [vmem:[#allocation2 + $0xf0] sm:$0xff]
        %v235 = vld [vmem:[#allocation2 + $0xf8] sm:$0xff]
        %v236 = vld [vmem:[%s179] sm:$0xff]
        %v237 = vld [vmem:[%s179 + $0x8] sm:$0xff]
        %v238 = vld [vmem:[%s179 + $0x10] sm:$0xff]
        %v239 = vld [vmem:[%s179 + $0x18] sm:$0xff]
        %v240 = vld [vmem:[%s179 + $0x20] sm:$0xff]
        %v241 = vld [vmem:[%s179 + $0x28] sm:$0xff]
        %v242 = vld [vmem:[%s179 + $0x30] sm:$0xff]
        %v243 = vld [vmem:[%s179 + $0x38] sm:$0xff]
        %v244 = vld [vmem:[%s179 + $0x40] sm:$0xff]
        %v245 = vld [vmem:[%s179 + $0x48] sm:$0xff]
        %v246 = vld [vmem:[%s179 + $0x50] sm:$0xff]
        %v247 = vld [vmem:[%s179 + $0x58] sm:$0xff]
        %v248 = vld [vmem:[%s179 + $0x60] sm:$0xff]
        %v249 = vld [vmem:[%s179 + $0x68] sm:$0xff]
        %v250 = vld [vmem:[%s179 + $0x70] sm:$0xff]
        %v251 = vld [vmem:[%s179 + $0x78] sm:$0xff]
        %v252 = vld [vmem:[%s179 + $0x80] sm:$0xff]
        %v253 = vld [vmem:[%s179 + $0x88] sm:$0xff]
        %v254 = vld [vmem:[%s179 + $0x90] sm:$0xff]
        %v255 = vld [vmem:[%s179 + $0x98] sm:$0xff]
        %v256 = vld [vmem:[%s179 + $0xa0] sm:$0xff]
        %v257 = vld [vmem:[%s179 + $0xa8] sm:$0xff]
        %v258 = vld [vmem:[%s179 + $0xb0] sm:$0xff]
        %v259 = vld [vmem:[%s179 + $0xb8] sm:$0xff]
        %v260 = vld [vmem:[%s179 + $0xc0] sm:$0xff]
        %v261 = vld [vmem:[%s179 + $0xc8] sm:$0xff]
        %v262 = vld [vmem:[%s179 + $0xd0] sm:$0xff]
        %v263 = vld [vmem:[%s179 + $0xd8] sm:$0xff]
        %v264 = vld [vmem:[%s179 + $0xe0] sm:$0xff]
        %v265 = vld [vmem:[%s179 + $0xe8] sm:$0xff]
        %v266 = vld [vmem:[%s179 + $0xf0] sm:$0xff]
        %v267 = vld [vmem:[%s179 + $0xf8] sm:$0xff]
        %v268 = vld [vmem:[%s179 + $0x100] sm:$0xff]
        %v269 = vld [vmem:[%s179 + $0x108] sm:$0xff]
        %v270 = vld [vmem:[%s179 + $0x110] sm:$0xff]
        %v271 = vld [vmem:[%s179 + $0x118] sm:$0xff]
        %v272 = vld [vmem:[%s179 + $0x120] sm:$0xff]
        %v273 = vld [vmem:[%s179 + $0x128] sm:$0xff]
        %v274 = vld [vmem:[%s179 + $0x130] sm:$0xff]
        %v275 = vld [vmem:[%s179 + $0x138] sm:$0xff]
        %v276 = vld [vmem:[%s179 + $0x140] sm:$0xff]
        %v277 = vld [vmem:[%s179 + $0x148] sm:$0xff]
        %v278 = vld [vmem:[%s179 + $0x150] sm:$0xff]
        %v279 = vld [vmem:[%s179 + $0x158] sm:$0xff]
        %v280 = vld [vmem:[%s179 + $0x160] sm:$0xff]
        %v281 = vld [vmem:[%s179 + $0x168] sm:$0xff]
        %v282 = vld [vmem:[%s179 + $0x170] sm:$0xff]
        %v283 = vld [vmem:[%s179 + $0x178] sm:$0xff]
        %v284 = vld [vmem:[%s179 + $0x180] sm:$0xff]
        %v285 = vld [vmem:[%s179 + $0x188] sm:$0xff]
        %v286 = vld [vmem:[%s179 + $0x190] sm:$0xff]
        %v287 = vld [vmem:[%s179 + $0x198] sm:$0xff]
        %v288 = vld [vmem:[%s179 + $0x1a0] sm:$0xff]
        %v289 = vld [vmem:[%s179 + $0x1a8] sm:$0xff]
        %v290 = vld [vmem:[%s179 + $0x1b0] sm:$0xff]
        %v291 = vld [vmem:[%s179 + $0x1b8] sm:$0xff]
        %v292 = vld [vmem:[%s179 + $0x1c0] sm:$0xff]
        %v293 = vld [vmem:[%s179 + $0x1c8] sm:$0xff]
        %v294 = vld [vmem:[%s179 + $0x1d0] sm:$0xff]
        %v295 = vld [vmem:[%s179 + $0x1d8] sm:$0xff]
        %v296 = vld [vmem:[%s179 + $0x1e0] sm:$0xff]
        %v297 = vld [vmem:[%s179 + $0x1e8] sm:$0xff]
        %v298 = vld [vmem:[%s179 + $0x1f0] sm:$0xff]
        %v299 = vld [vmem:[%s179 + $0x1f8] sm:$0xff]
        %v332 = vunpack.c.l.b16 %v204
        %v333 = vunpack.c.h.b16 %v204
        %v334 = vunpack.c.l.b16 %v205
        %v335 = vunpack.c.h.b16 %v205
        %v336 = vunpack.c.l.b16 %v206
        %v337 = vunpack.c.h.b16 %v206
        %v338 = vunpack.c.l.b16 %v207
        %v339 = vunpack.c.h.b16 %v207
        %v340 = vunpack.c.l.b16 %v208
        %v341 = vunpack.c.h.b16 %v208
        %v342 = vunpack.c.l.b16 %v209
        %v343 = vunpack.c.h.b16 %v209
        %v344 = vunpack.c.l.b16 %v210
        %v345 = vunpack.c.h.b16 %v210
        %v346 = vunpack.c.l.b16 %v211
        %v347 = vunpack.c.h.b16 %v211
        %v348 = vunpack.c.l.b16 %v212
        %v349 = vunpack.c.h.b16 %v212
        %v350 = vunpack.c.l.b16 %v213
        %v351 = vunpack.c.h.b16 %v213
        %v352 = vunpack.c.l.b16 %v214
        %v353 = vunpack.c.h.b16 %v214
        %v354 = vunpack.c.l.b16 %v215
        %v355 = vunpack.c.h.b16 %v215
        %v356 = vunpack.c.l.b16 %v216
        %v357 = vunpack.c.h.b16 %v216
        %v358 = vunpack.c.l.b16 %v217
        %v359 = vunpack.c.h.b16 %v217
        %v360 = vunpack.c.l.b16 %v218
        %v361 = vunpack.c.h.b16 %v218
        %v362 = vunpack.c.l.b16 %v219
        %v363 = vunpack.c.h.b16 %v219
        %v364 = vunpack.c.l.b16 %v220
        %v365 = vunpack.c.h.b16 %v220
        %v366 = vunpack.c.l.b16 %v221
        %v367 = vunpack.c.h.b16 %v221
        %v368 = vunpack.c.l.b16 %v222
        %v369 = vunpack.c.h.b16 %v222
        %v370 = vunpack.c.l.b16 %v223
        %v371 = vunpack.c.h.b16 %v223
        %v372 = vunpack.c.l.b16 %v224
        %v373 = vunpack.c.h.b16 %v224
        %v374 = vunpack.c.l.b16 %v225
        %v375 = vunpack.c.h.b16 %v225
        %v376 = vunpack.c.l.b16 %v226
        %v377 = vunpack.c.h.b16 %v226
        %v378 = vunpack.c.l.b16 %v227
        %v379 = vunpack.c.h.b16 %v227
        %v380 = vunpack.c.l.b16 %v228
        %v381 = vunpack.c.h.b16 %v228
        %v382 = vunpack.c.l.b16 %v229
        %v383 = vunpack.c.h.b16 %v229
        %v384 = vunpack.c.l.b16 %v230
        %v385 = vunpack.c.h.b16 %v230
        %v386 = vunpack.c.l.b16 %v231
        %v387 = vunpack.c.h.b16 %v231
        %v388 = vunpack.c.l.b16 %v232
        %v389 = vunpack.c.h.b16 %v232
        %v390 = vunpack.c.l.b16 %v233
        %v391 = vunpack.c.h.b16 %v233
        %v392 = vunpack.c.l.b16 %v234
        %v393 = vunpack.c.h.b16 %v234
        %v394 = vunpack.c.l.b16 %v235
        %v395 = vunpack.c.h.b16 %v235
        %v396 = vpack.c.b16 %v334, %v332
        %v397 = vpack.c.b16 %v335, %v333
        %v398 = vpack.c.b16 %v338, %v336
        %v399 = vpack.c.b16 %v339, %v337
        %v400 = vpack.c.b16 %v342, %v340
        %v401 = vpack.c.b16 %v343, %v341
        %v402 = vpack.c.b16 %v346, %v344
        %v403 = vpack.c.b16 %v347, %v345
        %v404 = vpack.c.b16 %v350, %v348
        %v405 = vpack.c.b16 %v351, %v349
        %v406 = vpack.c.b16 %v354, %v352
        %v407 = vpack.c.b16 %v355, %v353
        %v408 = vpack.c.b16 %v358, %v356
        %v409 = vpack.c.b16 %v359, %v357
        %v410 = vpack.c.b16 %v362, %v360
        %v411 = vpack.c.b16 %v363, %v361
        %v412 = vpack.c.b16 %v366, %v364
        %v413 = vpack.c.b16 %v367, %v365
        %v414 = vpack.c.b16 %v370, %v368
        %v415 = vpack.c.b16 %v371, %v369
        %v416 = vpack.c.b16 %v374, %v372
        %v417 = vpack.c.b16 %v375, %v373
        %v418 = vpack.c.b16 %v378, %v376
        %v419 = vpack.c.b16 %v379, %v377
        %v420 = vpack.c.b16 %v382, %v380
        %v421 = vpack.c.b16 %v383, %v381
        %v422 = vpack.c.b16 %v386, %v384
        %v423 = vpack.c.b16 %v387, %v385
        %v424 = vpack.c.b16 %v390, %v388
        %v425 = vpack.c.b16 %v391, %v389
        %v426 = vpack.c.b16 %v394, %v392
        %v427 = vpack.c.b16 %v395, %v393
        %v524 = vunpack.c.l.b16 %v236
        %v525 = vunpack.c.h.b16 %v236
        %v526 = vunpack.c.l.b16 %v237
        %v527 = vunpack.c.h.b16 %v237
        %v528 = vunpack.c.l.b16 %v238
        %v529 = vunpack.c.h.b16 %v238
        %v530 = vunpack.c.l.b16 %v239
        %v531 = vunpack.c.h.b16 %v239
        %v532 = vunpack.c.l.b16 %v240
        %v533 = vunpack.c.h.b16 %v240
        %v534 = vunpack.c.l.b16 %v241
        %v535 = vunpack.c.h.b16 %v241
        %v536 = vunpack.c.l.b16 %v242
        %v537 = vunpack.c.h.b16 %v242
        %v538 = vunpack.c.l.b16 %v243
        %v539 = vunpack.c.h.b16 %v243
        %v540 = vunpack.c.l.b16 %v244
        %v541 = vunpack.c.h.b16 %v244
        %v542 = vunpack.c.l.b16 %v245
        %v543 = vunpack.c.h.b16 %v245
        %v544 = vunpack.c.l.b16 %v246
        %v545 = vunpack.c.h.b16 %v246
        %v546 = vunpack.c.l.b16 %v247
        %v547 = vunpack.c.h.b16 %v247
        %v548 = vunpack.c.l.b16 %v248
        %v549 = vunpack.c.h.b16 %v248
        %v550 = vunpack.c.l.b16 %v249
        %v551 = vunpack.c.h.b16 %v249
        %v552 = vunpack.c.l.b16 %v250
        %v553 = vunpack.c.h.b16 %v250
        %v554 = vunpack.c.l.b16 %v251
        %v555 = vunpack.c.h.b16 %v251
        %v556 = vunpack.c.l.b16 %v252
        %v557 = vunpack.c.h.b16 %v252
        %v558 = vunpack.c.l.b16 %v253
        %v559 = vunpack.c.h.b16 %v253
        %v560 = vunpack.c.l.b16 %v254
        %v561 = vunpack.c.h.b16 %v254
        %v562 = vunpack.c.l.b16 %v255
        %v563 = vunpack.c.h.b16 %v255
        %v564 = vunpack.c.l.b16 %v256
        %v565 = vunpack.c.h.b16 %v256
        %v566 = vunpack.c.l.b16 %v257
        %v567 = vunpack.c.h.b16 %v257
        %v568 = vunpack.c.l.b16 %v258
        %v569 = vunpack.c.h.b16 %v258
        %v570 = vunpack.c.l.b16 %v259
        %v571 = vunpack.c.h.b16 %v259
        %v572 = vunpack.c.l.b16 %v260
        %v573 = vunpack.c.h.b16 %v260
        %v574 = vunpack.c.l.b16 %v261
        %v575 = vunpack.c.h.b16 %v261
        %v576 = vunpack.c.l.b16 %v262
        %v577 = vunpack.c.h.b16 %v262
        %v578 = vunpack.c.l.b16 %v263
        %v579 = vunpack.c.h.b16 %v263
        %v580 = vunpack.c.l.b16 %v264
        %v581 = vunpack.c.h.b16 %v264
        %v582 = vunpack.c.l.b16 %v265
        %v583 = vunpack.c.h.b16 %v265
        %v584 = vunpack.c.l.b16 %v266
        %v585 = vunpack.c.h.b16 %v266
        %v586 = vunpack.c.l.b16 %v267
        %v587 = vunpack.c.h.b16 %v267
        %v588 = vunpack.c.l.b16 %v268
        %v589 = vunpack.c.h.b16 %v268
        %v590 = vunpack.c.l.b16 %v269
        %v591 = vunpack.c.h.b16 %v269
        %v592 = vunpack.c.l.b16 %v270
        %v593 = vunpack.c.h.b16 %v270
        %v594 = vunpack.c.l.b16 %v271
        %v595 = vunpack.c.h.b16 %v271
        %v596 = vunpack.c.l.b16 %v272
        %v597 = vunpack.c.h.b16 %v272
        %v598 = vunpack.c.l.b16 %v273
        %v599 = vunpack.c.h.b16 %v273
        %v600 = vunpack.c.l.b16 %v274
        %v601 = vunpack.c.h.b16 %v274
        %v602 = vunpack.c.l.b16 %v275
        %v603 = vunpack.c.h.b16 %v275
        %v604 = vunpack.c.l.b16 %v276
        %v605 = vunpack.c.h.b16 %v276
        %v606 = vunpack.c.l.b16 %v277
        %v607 = vunpack.c.h.b16 %v277
        %v608 = vunpack.c.l.b16 %v278
        %v609 = vunpack.c.h.b16 %v278
        %v610 = vunpack.c.l.b16 %v279
        %v611 = vunpack.c.h.b16 %v279
        %v612 = vunpack.c.l.b16 %v280
        %v613 = vunpack.c.h.b16 %v280
        %v614 = vunpack.c.l.b16 %v281
        %v615 = vunpack.c.h.b16 %v281
        %v616 = vunpack.c.l.b16 %v282
        %v617 = vunpack.c.h.b16 %v282
        %v618 = vunpack.c.l.b16 %v283
        %v619 = vunpack.c.h.b16 %v283
        %v620 = vunpack.c.l.b16 %v284
        %v621 = vunpack.c.h.b16 %v284
        %v622 = vunpack.c.l.b16 %v285
        %v623 = vunpack.c.h.b16 %v285
        %v624 = vunpack.c.l.b16 %v286
        %v625 = vunpack.c.h.b16 %v286
        %v626 = vunpack.c.l.b16 %v287
        %v627 = vunpack.c.h.b16 %v287
        %v628 = vunpack.c.l.b16 %v288
        %v629 = vunpack.c.h.b16 %v288
        %v630 = vunpack.c.l.b16 %v289
        %v631 = vunpack.c.h.b16 %v289
        %v632 = vunpack.c.l.b16 %v290
        %v633 = vunpack.c.h.b16 %v290
        %v634 = vunpack.c.l.b16 %v291
        %v635 = vunpack.c.h.b16 %v291
        %v636 = vunpack.c.l.b16 %v292
        %v637 = vunpack.c.h.b16 %v292
        %v638 = vunpack.c.l.b16 %v293
        %v639 = vunpack.c.h.b16 %v293
        %v640 = vunpack.c.l.b16 %v294
        %v641 = vunpack.c.h.b16 %v294
        %v642 = vunpack.c.l.b16 %v295
        %v643 = vunpack.c.h.b16 %v295
        %v644 = vunpack.c.l.b16 %v296
        %v645 = vunpack.c.h.b16 %v296
        %v646 = vunpack.c.l.b16 %v297
        %v647 = vunpack.c.h.b16 %v297
        %v648 = vunpack.c.l.b16 %v298
        %v649 = vunpack.c.h.b16 %v298
        %v650 = vunpack.c.l.b16 %v299
        %v651 = vunpack.c.h.b16 %v299
        %v652 = vpack.c.b16 %v528, %v524
        %v653 = vpack.c.b16 %v529, %v525
        %v654 = vpack.c.b16 %v530, %v526
        %v655 = vpack.c.b16 %v531, %v527
        %v656 = vpack.c.b16 %v536, %v532
        %v657 = vpack.c.b16 %v537, %v533
        %v658 = vpack.c.b16 %v538, %v534
        %v659 = vpack.c.b16 %v539, %v535
        %v660 = vpack.c.b16 %v544, %v540
        %v661 = vpack.c.b16 %v545, %v541
        %v662 = vpack.c.b16 %v546, %v542
        %v663 = vpack.c.b16 %v547, %v543
        %v664 = vpack.c.b16 %v552, %v548
        %v665 = vpack.c.b16 %v553, %v549
        %v666 = vpack.c.b16 %v554, %v550
        %v667 = vpack.c.b16 %v555, %v551
        %v668 = vpack.c.b16 %v560, %v556
        %v669 = vpack.c.b16 %v561, %v557
        %v670 = vpack.c.b16 %v562, %v558
        %v671 = vpack.c.b16 %v563, %v559
        %v672 = vpack.c.b16 %v568, %v564
        %v673 = vpack.c.b16 %v569, %v565
        %v674 = vpack.c.b16 %v570, %v566
        %v675 = vpack.c.b16 %v571, %v567
        %v676 = vpack.c.b16 %v576, %v572
        %v677 = vpack.c.b16 %v577, %v573
        %v678 = vpack.c.b16 %v578, %v574
        %v679 = vpack.c.b16 %v579, %v575
        %v680 = vpack.c.b16 %v584, %v580
        %v681 = vpack.c.b16 %v585, %v581
        %v682 = vpack.c.b16 %v586, %v582
        %v683 = vpack.c.b16 %v587, %v583
        %v684 = vpack.c.b16 %v592, %v588
        %v685 = vpack.c.b16 %v593, %v589
        %v686 = vpack.c.b16 %v594, %v590
        %v687 = vpack.c.b16 %v595, %v591
        %v688 = vpack.c.b16 %v600, %v596
        %v689 = vpack.c.b16 %v601, %v597
        %v690 = vpack.c.b16 %v602, %v598
        %v691 = vpack.c.b16 %v603, %v599
        %v692 = vpack.c.b16 %v608, %v604
        %v693 = vpack.c.b16 %v609, %v605
        %v694 = vpack.c.b16 %v610, %v606
        %v695 = vpack.c.b16 %v611, %v607
        %v696 = vpack.c.b16 %v616, %v612
        %v697 = vpack.c.b16 %v617, %v613
        %v698 = vpack.c.b16 %v618, %v614
        %v699 = vpack.c.b16 %v619, %v615
        %v700 = vpack.c.b16 %v624, %v620
        %v701 = vpack.c.b16 %v625, %v621
        %v702 = vpack.c.b16 %v626, %v622
        %v703 = vpack.c.b16 %v627, %v623
        %v704 = vpack.c.b16 %v632, %v628
        %v705 = vpack.c.b16 %v633, %v629
        %v706 = vpack.c.b16 %v634, %v630
        %v707 = vpack.c.b16 %v635, %v631
        %v708 = vpack.c.b16 %v640, %v636
        %v709 = vpack.c.b16 %v641, %v637
        %v710 = vpack.c.b16 %v642, %v638
        %v711 = vpack.c.b16 %v643, %v639
        %v712 = vpack.c.b16 %v648, %v644
        %v713 = vpack.c.b16 %v649, %v645
        %v714 = vpack.c.b16 %v650, %v646
        %v715 = vpack.c.b16 %v651, %v647
        %780 = vmatprep.subr.bf16.mxu0 %v681
        %781 = vmatpush1.bf16.msra.mxu0 %v680
        %782 = vmatprep.subr.bf16.mxu0 %v677
        %783 = vmatpush1.bf16.msra.mxu0 %v676
        %784 = vmatprep.subr.bf16.mxu0 %v673
        %785 = vmatpush1.bf16.msra.mxu0 %v672
        %786 = vmatprep.subr.bf16.mxu0 %v669
        %787 = vmatpush1.bf16.msra.mxu0 %v668
        %788 = vmatprep.subr.bf16.mxu0 %v665
        %789 = vmatpush1.bf16.msra.mxu0 %v664
        %790 = vmatprep.subr.bf16.mxu0 %v661
        %791 = vmatpush1.bf16.msra.mxu0 %v660
        %792 = vmatprep.subr.bf16.mxu0 %v657
        %793 = vmatpush1.bf16.msra.mxu0 %v656
        %794 = vmatprep.subr.bf16.mxu0 %v653
        %795 = vmatpush1.bf16.msra.mxu0 %v652
        %796 = vmatprep.subr.bf16.mxu0 %v713
        %797 = vmatpush2.bf16.msra.mxu0 %v712
        %798 = vmatprep.subr.bf16.mxu0 %v709
        %799 = vmatpush2.bf16.msra.mxu0 %v708
        %800 = vmatprep.subr.bf16.mxu0 %v705
        %801 = vmatpush2.bf16.msra.mxu0 %v704
        %802 = vmatprep.subr.bf16.mxu0 %v701
        %803 = vmatpush2.bf16.msra.mxu0 %v700
        %804 = vmatprep.subr.bf16.mxu0 %v697
        %805 = vmatpush2.bf16.msra.mxu0 %v696
        %806 = vmatprep.subr.bf16.mxu0 %v693
        %807 = vmatpush2.bf16.msra.mxu0 %v692
        %808 = vmatprep.subr.bf16.mxu0 %v689
        %809 = vmatpush2.bf16.msra.mxu0 %v688
        %810 = vmatprep.subr.bf16.mxu0 %v685
        %811 = vmatpush2.bf16.msra.mxu0 %v684
        %812 = vmatprep.mubr.bf16.mxu0 %v397
        %813 = vmatmul.mubr.bf16.gmra.mxu0 %v396
        %v814 = vpop.f32.mrf.mxu0
        %v815 = vadd.f32 0.0, %v814
        %v816 = vpop.f32.mrf.mxu0
        %v817 = vadd.f32 0.0, %v816
        %v818 = vpop.f32.mrf.mxu0
        %v819 = vadd.f32 0.0, %v818
        %v820 = vpop.f32.mrf.mxu0
        %v821 = vadd.f32 0.0, %v820
        %822 = vmatprep.mubr.bf16.mxu0 %v399
        %823 = vmatmul.mubr.bf16.gmra.mxu0 %v398
        %v824 = vpop.f32.mrf.mxu0
        %v825 = vadd.f32 0.0, %v824
        %v826 = vpop.f32.mrf.mxu0
        %v827 = vadd.f32 0.0, %v826
        %v828 = vpop.f32.mrf.mxu0
        %v829 = vadd.f32 0.0, %v828
        %v830 = vpop.f32.mrf.mxu0
        %v831 = vadd.f32 0.0, %v830
        %832 = vmatprep.mubr.bf16.mxu0 %v401
        %833 = vmatmul.mubr.bf16.gmra.mxu0 %v400
        %v834 = vpop.f32.mrf.mxu0
        %v835 = vadd.f32 0.0, %v834
        %v836 = vpop.f32.mrf.mxu0
        %v837 = vadd.f32 0.0, %v836
        %v838 = vpop.f32.mrf.mxu0
        %v839 = vadd.f32 0.0, %v838
        %v840 = vpop.f32.mrf.mxu0
        %v841 = vadd.f32 0.0, %v840
        %842 = vmatprep.mubr.bf16.mxu0 %v403
        %843 = vmatmul.mubr.bf16.gmra.mxu0 %v402
        %v844 = vpop.f32.mrf.mxu0
        %v845 = vadd.f32 0.0, %v844
        %v846 = vpop.f32.mrf.mxu0
        %v847 = vadd.f32 0.0, %v846
        %v848 = vpop.f32.mrf.mxu0
        %v849 = vadd.f32 0.0, %v848
        %v850 = vpop.f32.mrf.mxu0
        %v851 = vadd.f32 0.0, %v850
        %852 = vmatprep.mubr.bf16.mxu0 %v405
        %853 = vmatmul.mubr.bf16.gmra.mxu0 %v404
        %v854 = vpop.f32.mrf.mxu0
        %v855 = vadd.f32 0.0, %v854
        %v856 = vpop.f32.mrf.mxu0
        %v857 = vadd.f32 0.0, %v856
        %v858 = vpop.f32.mrf.mxu0
        %v859 = vadd.f32 0.0, %v858
        %v860 = vpop.f32.mrf.mxu0
        %v861 = vadd.f32 0.0, %v860
        %862 = vmatprep.mubr.bf16.mxu0 %v407
        %863 = vmatmul.mubr.bf16.gmra.mxu0 %v406
        %v864 = vpop.f32.mrf.mxu0
        %v865 = vadd.f32 0.0, %v864
        %v866 = vpop.f32.mrf.mxu0
        %v867 = vadd.f32 0.0, %v866
        %v868 = vpop.f32.mrf.mxu0
        %v869 = vadd.f32 0.0, %v868
        %v870 = vpop.f32.mrf.mxu0
        %v871 = vadd.f32 0.0, %v870
        %872 = vmatprep.mubr.bf16.mxu0 %v409
        %873 = vmatmul.mubr.bf16.gmra.mxu0 %v408
        %v874 = vpop.f32.mrf.mxu0
        %v875 = vadd.f32 0.0, %v874
        %v876 = vpop.f32.mrf.mxu0
        %v877 = vadd.f32 0.0, %v876
        %v878 = vpop.f32.mrf.mxu0
        %v879 = vadd.f32 0.0, %v878
        %v880 = vpop.f32.mrf.mxu0
        %v881 = vadd.f32 0.0, %v880
        %882 = vmatprep.mubr.bf16.mxu0 %v411
        %883 = vmatmul.mubr.bf16.gmra.mxu0 %v410
        %v884 = vpop.f32.mrf.mxu0
        %v885 = vadd.f32 0.0, %v884
        %v886 = vpop.f32.mrf.mxu0
        %v887 = vadd.f32 0.0, %v886
        %v888 = vpop.f32.mrf.mxu0
        %v889 = vadd.f32 0.0, %v888
        %v890 = vpop.f32.mrf.mxu0
        %v891 = vadd.f32 0.0, %v890
        %892 = vmatprep.mubr.bf16.mxu0 %v413
        %893 = vmatmul.mubr.bf16.gmra.mxu0 %v412
        %v894 = vpop.f32.mrf.mxu0
        %v895 = vadd.f32 0.0, %v894
        %v896 = vpop.f32.mrf.mxu0
        %v897 = vadd.f32 0.0, %v896
        %v898 = vpop.f32.mrf.mxu0
        %v899 = vadd.f32 0.0, %v898
        %v900 = vpop.f32.mrf.mxu0
        %v901 = vadd.f32 0.0, %v900
        %902 = vmatprep.mubr.bf16.mxu0 %v415
        %903 = vmatmul.mubr.bf16.gmra.mxu0 %v414
        %v904 = vpop.f32.mrf.mxu0
        %v905 = vadd.f32 0.0, %v904
        %v906 = vpop.f32.mrf.mxu0
        %v907 = vadd.f32 0.0, %v906
        %v908 = vpop.f32.mrf.mxu0
        %v909 = vadd.f32 0.0, %v908
        %v910 = vpop.f32.mrf.mxu0
        %v911 = vadd.f32 0.0, %v910
        %912 = vmatprep.mubr.bf16.mxu0 %v417
        %913 = vmatmul.mubr.bf16.gmra.mxu0 %v416
        %v914 = vpop.f32.mrf.mxu0
        %v915 = vadd.f32 0.0, %v914
        %v916 = vpop.f32.mrf.mxu0
        %v917 = vadd.f32 0.0, %v916
        %v918 = vpop.f32.mrf.mxu0
        %v919 = vadd.f32 0.0, %v918
        %v920 = vpop.f32.mrf.mxu0
        %v921 = vadd.f32 0.0, %v920
        %922 = vmatprep.mubr.bf16.mxu0 %v419
        %923 = vmatmul.mubr.bf16.gmra.mxu0 %v418
        %v924 = vpop.f32.mrf.mxu0
        %v925 = vadd.f32 0.0, %v924
        %v926 = vpop.f32.mrf.mxu0
        %v927 = vadd.f32 0.0, %v926
        %v928 = vpop.f32.mrf.mxu0
        %v929 = vadd.f32 0.0, %v928
        %v930 = vpop.f32.mrf.mxu0
        %v931 = vadd.f32 0.0, %v930
        %932 = vmatprep.mubr.bf16.mxu0 %v421
        %933 = vmatmul.mubr.bf16.gmra.mxu0 %v420
        %v934 = vpop.f32.mrf.mxu0
        %v935 = vadd.f32 0.0, %v934
        %v936 = vpop.f32.mrf.mxu0
        %v937 = vadd.f32 0.0, %v936
        %v938 = vpop.f32.mrf.mxu0
        %v939 = vadd.f32 0.0, %v938
        %v940 = vpop.f32.mrf.mxu0
        %v941 = vadd.f32 0.0, %v940
        %942 = vmatprep.mubr.bf16.mxu0 %v423
        %943 = vmatmul.mubr.bf16.gmra.mxu0 %v422
        %v944 = vpop.f32.mrf.mxu0
        %v945 = vadd.f32 0.0, %v944
        %v946 = vpop.f32.mrf.mxu0
        %v947 = vadd.f32 0.0, %v946
        %v948 = vpop.f32.mrf.mxu0
        %v949 = vadd.f32 0.0, %v948
        %v950 = vpop.f32.mrf.mxu0
        %v951 = vadd.f32 0.0, %v950
        %952 = vmatprep.mubr.bf16.mxu0 %v425
        %953 = vmatmul.mubr.bf16.gmra.mxu0 %v424
        %v954 = vpop.f32.mrf.mxu0
        %v955 = vadd.f32 0.0, %v954
        %v956 = vpop.f32.mrf.mxu0
        %v957 = vadd.f32 0.0, %v956
        %v958 = vpop.f32.mrf.mxu0
        %v959 = vadd.f32 0.0, %v958
        %v960 = vpop.f32.mrf.mxu0
        %v961 = vadd.f32 0.0, %v960
        %962 = vmatprep.mubr.bf16.mxu0 %v427
        %963 = vmatmul.mubr.bf16.gmra.mxu0 %v426
        %v964 = vpop.f32.mrf.mxu0
        %v965 = vadd.f32 0.0, %v964
        %v966 = vpop.f32.mrf.mxu0
        %v967 = vadd.f32 0.0, %v966
        %v968 = vpop.f32.mrf.mxu0
        %v969 = vadd.f32 0.0, %v968
        %v970 = vpop.f32.mrf.mxu0
        %v971 = vadd.f32 0.0, %v970
        %972 = vdwg.mxu0
        %973 = vmatprep.subr.bf16.mxu0 %v683
        %974 = vmatpush1.bf16.msra.mxu0 %v682
        %975 = vmatprep.subr.bf16.mxu0 %v679
        %976 = vmatpush1.bf16.msra.mxu0 %v678
        %977 = vmatprep.subr.bf16.mxu0 %v675
        %978 = vmatpush1.bf16.msra.mxu0 %v674
        %979 = vmatprep.subr.bf16.mxu0 %v671
        %980 = vmatpush1.bf16.msra.mxu0 %v670
        %981 = vmatprep.subr.bf16.mxu0 %v667
        %982 = vmatpush1.bf16.msra.mxu0 %v666
        %983 = vmatprep.subr.bf16.mxu0 %v663
        %984 = vmatpush1.bf16.msra.mxu0 %v662
        %985 = vmatprep.subr.bf16.mxu0 %v659
        %986 = vmatpush1.bf16.msra.mxu0 %v658
        %987 = vmatprep.subr.bf16.mxu0 %v655
        %988 = vmatpush1.bf16.msra.mxu0 %v654
        %989 = vmatprep.subr.bf16.mxu0 %v715
        %990 = vmatpush2.bf16.msra.mxu0 %v714
        %991 = vmatprep.subr.bf16.mxu0 %v711
        %992 = vmatpush2.bf16.msra.mxu0 %v710
        %993 = vmatprep.subr.bf16.mxu0 %v707
        %994 = vmatpush2.bf16.msra.mxu0 %v706
        %995 = vmatprep.subr.bf16.mxu0 %v703
        %996 = vmatpush2.bf16.msra.mxu0 %v702
        %997 = vmatprep.subr.bf16.mxu0 %v699
        %998 = vmatpush2.bf16.msra.mxu0 %v698
        %999 = vmatprep.subr.bf16.mxu0 %v695
        %1000 = vmatpush2.bf16.msra.mxu0 %v694
        %1001 = vmatprep.subr.bf16.mxu0 %v691
        %1002 = vmatpush2.bf16.msra.mxu0 %v690
        %1003 = vmatprep.subr.bf16.mxu0 %v687
        %1004 = vmatpush2.bf16.msra.mxu0 %v686
        %1005 = vmatprep.mubr.bf16.mxu0 %v397
        %1006 = vmatmul.mubr.bf16.gmra.mxu0 %v396
        %v1007 = vpop.f32.mrf.mxu0
        %v1008 = vadd.f32 0.0, %v1007
        %v1009 = vpop.f32.mrf.mxu0
        %v1010 = vadd.f32 0.0, %v1009
        %v1011 = vpop.f32.mrf.mxu0
        %v1012 = vadd.f32 0.0, %v1011
        %v1013 = vpop.f32.mrf.mxu0
        %v1014 = vadd.f32 0.0, %v1013
        %1015 = vmatprep.mubr.bf16.mxu0 %v399
        %1016 = vmatmul.mubr.bf16.gmra.mxu0 %v398
        %v1017 = vpop.f32.mrf.mxu0
        %v1018 = vadd.f32 0.0, %v1017
        %v1019 = vpop.f32.mrf.mxu0
        %v1020 = vadd.f32 0.0, %v1019
        %v1021 = vpop.f32.mrf.mxu0
        %v1022 = vadd.f32 0.0, %v1021
        %v1023 = vpop.f32.mrf.mxu0
        %v1024 = vadd.f32 0.0, %v1023
        %1025 = vmatprep.mubr.bf16.mxu0 %v401
        %1026 = vmatmul.mubr.bf16.gmra.mxu0 %v400
        %v1027 = vpop.f32.mrf.mxu0
        %v1028 = vadd.f32 0.0, %v1027
        %v1029 = vpop.f32.mrf.mxu0
        %v1030 = vadd.f32 0.0, %v1029
        %v1031 = vpop.f32.mrf.mxu0
        %v1032 = vadd.f32 0.0, %v1031
        %v1033 = vpop.f32.mrf.mxu0
        %v1034 = vadd.f32 0.0, %v1033
        %1035 = vmatprep.mubr.bf16.mxu0 %v403
        %1036 = vmatmul.mubr.bf16.gmra.mxu0 %v402
        %v1037 = vpop.f32.mrf.mxu0
        %v1038 = vadd.f32 0.0, %v1037
        %v1039 = vpop.f32.mrf.mxu0
        %v1040 = vadd.f32 0.0, %v1039
        %v1041 = vpop.f32.mrf.mxu0
        %v1042 = vadd.f32 0.0, %v1041
        %v1043 = vpop.f32.mrf.mxu0
        %v1044 = vadd.f32 0.0, %v1043
        %1045 = vmatprep.mubr.bf16.mxu0 %v405
        %1046 = vmatmul.mubr.bf16.gmra.mxu0 %v404
        %v1047 = vpop.f32.mrf.mxu0
        %v1048 = vadd.f32 0.0, %v1047
        %v1049 = vpop.f32.mrf.mxu0
        %v1050 = vadd.f32 0.0, %v1049
        %v1051 = vpop.f32.mrf.mxu0
        %v1052 = vadd.f32 0.0, %v1051
        %v1053 = vpop.f32.mrf.mxu0
        %v1054 = vadd.f32 0.0, %v1053
        %1055 = vmatprep.mubr.bf16.mxu0 %v407
        %1056 = vmatmul.mubr.bf16.gmra.mxu0 %v406
        %v1057 = vpop.f32.mrf.mxu0
        %v1058 = vadd.f32 0.0, %v1057
        %v1059 = vpop.f32.mrf.mxu0
        %v1060 = vadd.f32 0.0, %v1059
        %v1061 = vpop.f32.mrf.mxu0
        %v1062 = vadd.f32 0.0, %v1061
        %v1063 = vpop.f32.mrf.mxu0
        %v1064 = vadd.f32 0.0, %v1063
        %1065 = vmatprep.mubr.bf16.mxu0 %v409
        %1066 = vmatmul.mubr.bf16.gmra.mxu0 %v408
        %v1067 = vpop.f32.mrf.mxu0
        %v1068 = vadd.f32 0.0, %v1067
        %v1069 = vpop.f32.mrf.mxu0
        %v1070 = vadd.f32 0.0, %v1069
        %v1071 = vpop.f32.mrf.mxu0
        %v1072 = vadd.f32 0.0, %v1071
        %v1073 = vpop.f32.mrf.mxu0
        %v1074 = vadd.f32 0.0, %v1073
        %1075 = vmatprep.mubr.bf16.mxu0 %v411
        %1076 = vmatmul.mubr.bf16.gmra.mxu0 %v410
        %v1077 = vpop.f32.mrf.mxu0
        %v1078 = vadd.f32 0.0, %v1077
        %v1079 = vpop.f32.mrf.mxu0
        %v1080 = vadd.f32 0.0, %v1079
        %v1081 = vpop.f32.mrf.mxu0
        %v1082 = vadd.f32 0.0, %v1081
        %v1083 = vpop.f32.mrf.mxu0
        %v1084 = vadd.f32 0.0, %v1083
        %1085 = vmatprep.mubr.bf16.mxu0 %v413
        %1086 = vmatmul.mubr.bf16.gmra.mxu0 %v412
        %v1087 = vpop.f32.mrf.mxu0
        %v1088 = vadd.f32 0.0, %v1087
        %v1089 = vpop.f32.mrf.mxu0
        %v1090 = vadd.f32 0.0, %v1089
        %v1091 = vpop.f32.mrf.mxu0
        %v1092 = vadd.f32 0.0, %v1091
        %v1093 = vpop.f32.mrf.mxu0
        %v1094 = vadd.f32 0.0, %v1093
        %1095 = vmatprep.mubr.bf16.mxu0 %v415
        %1096 = vmatmul.mubr.bf16.gmra.mxu0 %v414
        %v1097 = vpop.f32.mrf.mxu0
        %v1098 = vadd.f32 0.0, %v1097
        %v1099 = vpop.f32.mrf.mxu0
        %v1100 = vadd.f32 0.0, %v1099
        %v1101 = vpop.f32.mrf.mxu0
        %v1102 = vadd.f32 0.0, %v1101
        %v1103 = vpop.f32.mrf.mxu0
        %v1104 = vadd.f32 0.0, %v1103
        %1105 = vmatprep.mubr.bf16.mxu0 %v417
        %1106 = vmatmul.mubr.bf16.gmra.mxu0 %v416
        %v1107 = vpop.f32.mrf.mxu0
        %v1108 = vadd.f32 0.0, %v1107
        %v1109 = vpop.f32.mrf.mxu0
        %v1110 = vadd.f32 0.0, %v1109
        %v1111 = vpop.f32.mrf.mxu0
        %v1112 = vadd.f32 0.0, %v1111
        %v1113 = vpop.f32.mrf.mxu0
        %v1114 = vadd.f32 0.0, %v1113
        %1115 = vmatprep.mubr.bf16.mxu0 %v419
        %1116 = vmatmul.mubr.bf16.gmra.mxu0 %v418
        %v1117 = vpop.f32.mrf.mxu0
        %v1118 = vadd.f32 0.0, %v1117
        %v1119 = vpop.f32.mrf.mxu0
        %v1120 = vadd.f32 0.0, %v1119
        %v1121 = vpop.f32.mrf.mxu0
        %v1122 = vadd.f32 0.0, %v1121
        %v1123 = vpop.f32.mrf.mxu0
        %v1124 = vadd.f32 0.0, %v1123
        %1125 = vmatprep.mubr.bf16.mxu0 %v421
        %1126 = vmatmul.mubr.bf16.gmra.mxu0 %v420
        %v1127 = vpop.f32.mrf.mxu0
        %v1128 = vadd.f32 0.0, %v1127
        %v1129 = vpop.f32.mrf.mxu0
        %v1130 = vadd.f32 0.0, %v1129
        %v1131 = vpop.f32.mrf.mxu0
        %v1132 = vadd.f32 0.0, %v1131
        %v1133 = vpop.f32.mrf.mxu0
        %v1134 = vadd.f32 0.0, %v1133
        %1135 = vmatprep.mubr.bf16.mxu0 %v423
        %1136 = vmatmul.mubr.bf16.gmra.mxu0 %v422
        %v1137 = vpop.f32.mrf.mxu0
        %v1138 = vadd.f32 0.0, %v1137
        %v1139 = vpop.f32.mrf.mxu0
        %v1140 = vadd.f32 0.0, %v1139
        %v1141 = vpop.f32.mrf.mxu0
        %v1142 = vadd.f32 0.0, %v1141
        %v1143 = vpop.f32.mrf.mxu0
        %v1144 = vadd.f32 0.0, %v1143
        %1145 = vmatprep.mubr.bf16.mxu0 %v425
        %1146 = vmatmul.mubr.bf16.gmra.mxu0 %v424
        %v1147 = vpop.f32.mrf.mxu0
        %v1148 = vadd.f32 0.0, %v1147
        %v1149 = vpop.f32.mrf.mxu0
        %v1150 = vadd.f32 0.0, %v1149
        %v1151 = vpop.f32.mrf.mxu0
        %v1152 = vadd.f32 0.0, %v1151
        %v1153 = vpop.f32.mrf.mxu0
        %v1154 = vadd.f32 0.0, %v1153
        %1155 = vmatprep.mubr.bf16.mxu0 %v427
        %1156 = vmatmul.mubr.bf16.gmra.mxu0 %v426
        %v1157 = vpop.f32.mrf.mxu0
        %v1158 = vadd.f32 0.0, %v1157
        %v1159 = vpop.f32.mrf.mxu0
        %v1160 = vadd.f32 0.0, %v1159
        %v1161 = vpop.f32.mrf.mxu0
        %v1162 = vadd.f32 0.0, %v1161
        %v1163 = vpop.f32.mrf.mxu0
        %v1164 = vadd.f32 0.0, %v1163
        %1165 = vdwg.mxu0
        %v1166 = vpack.c.bf16 %v819, %v815
        %v1167 = vpack.c.bf16 %v821, %v817
        %v1168 = vpack.c.bf16 %v1012, %v1008
        %v1169 = vpack.c.bf16 %v1014, %v1010
        %v1170 = vpack.c.bf16 %v829, %v825
        %v1171 = vpack.c.bf16 %v831, %v827
        %v1172 = vpack.c.bf16 %v1022, %v1018
        %v1173 = vpack.c.bf16 %v1024, %v1020
        %v1174 = vpack.c.bf16 %v839, %v835
        %v1175 = vpack.c.bf16 %v841, %v837
        %v1176 = vpack.c.bf16 %v1032, %v1028
        %v1177 = vpack.c.bf16 %v1034, %v1030
        %v1178 = vpack.c.bf16 %v849, %v845
        %v1179 = vpack.c.bf16 %v851, %v847
        %v1180 = vpack.c.bf16 %v1042, %v1038
        %v1181 = vpack.c.bf16 %v1044, %v1040
        %v1182 = vpack.c.bf16 %v859, %v855
        %v1183 = vpack.c.bf16 %v861, %v857
        %v1184 = vpack.c.bf16 %v1052, %v1048
        %v1185 = vpack.c.bf16 %v1054, %v1050
        %v1186 = vpack.c.bf16 %v869, %v865
        %v1187 = vpack.c.bf16 %v871, %v867
        %v1188 = vpack.c.bf16 %v1062, %v1058
        %v1189 = vpack.c.bf16 %v1064, %v1060
        %v1190 = vpack.c.bf16 %v879, %v875
        %v1191 = vpack.c.bf16 %v881, %v877
        %v1192 = vpack.c.bf16 %v1072, %v1068
        %v1193 = vpack.c.bf16 %v1074, %v1070
        %v1194 = vpack.c.bf16 %v889, %v885
        %v1195 = vpack.c.bf16 %v891, %v887
        %v1196 = vpack.c.bf16 %v1082, %v1078
        %v1197 = vpack.c.bf16 %v1084, %v1080
        %v1198 = vpack.c.bf16 %v899, %v895
        %v1199 = vpack.c.bf16 %v901, %v897
        %v1200 = vpack.c.bf16 %v1092, %v1088
        %v1201 = vpack.c.bf16 %v1094, %v1090
        %v1202 = vpack.c.bf16 %v909, %v905
        %v1203 = vpack.c.bf16 %v911, %v907
        %v1204 = vpack.c.bf16 %v1102, %v1098
        %v1205 = vpack.c.bf16 %v1104, %v1100
        %v1206 = vpack.c.bf16 %v919, %v915
        %v1207 = vpack.c.bf16 %v921, %v917
        %v1208 = vpack.c.bf16 %v1112, %v1108
        %v1209 = vpack.c.bf16 %v1114, %v1110
        %v1210 = vpack.c.bf16 %v929, %v925
        %v1211 = vpack.c.bf16 %v931, %v927
        %v1212 = vpack.c.bf16 %v1122, %v1118
        %v1213 = vpack.c.bf16 %v1124, %v1120
        %v1214 = vpack.c.bf16 %v939, %v935
        %v1215 = vpack.c.bf16 %v941, %v937
        %v1216 = vpack.c.bf16 %v1132, %v1128
        %v1217 = vpack.c.bf16 %v1134, %v1130
        %v1218 = vpack.c.bf16 %v949, %v945
        %v1219 = vpack.c.bf16 %v951, %v947
        %v1220 = vpack.c.bf16 %v1142, %v1138
        %v1221 = vpack.c.bf16 %v1144, %v1140
        %v1222 = vpack.c.bf16 %v959, %v955
        %v1223 = vpack.c.bf16 %v961, %v957
        %v1224 = vpack.c.bf16 %v1152, %v1148
        %v1225 = vpack.c.bf16 %v1154, %v1150
        %v1226 = vpack.c.bf16 %v969, %v965
        %v1227 = vpack.c.bf16 %v971, %v967
        %v1228 = vpack.c.bf16 %v1162, %v1158
        %v1229 = vpack.c.bf16 %v1164, %v1160
        %v1294 = vunpack.c.l.b16 %v1166
        %v1295 = vunpack.c.l.b16 %v1167
        %v1296 = vunpack.c.l.b16 %v1168
        %v1297 = vunpack.c.l.b16 %v1169
        %v1298 = vunpack.c.h.b16 %v1166
        %v1299 = vunpack.c.h.b16 %v1167
        %v1300 = vunpack.c.h.b16 %v1168
        %v1301 = vunpack.c.h.b16 %v1169
        %v1302 = vunpack.c.l.b16 %v1170
        %v1303 = vunpack.c.l.b16 %v1171
        %v1304 = vunpack.c.l.b16 %v1172
        %v1305 = vunpack.c.l.b16 %v1173
        %v1306 = vunpack.c.h.b16 %v1170
        %v1307 = vunpack.c.h.b16 %v1171
        %v1308 = vunpack.c.h.b16 %v1172
        %v1309 = vunpack.c.h.b16 %v1173
        %v1310 = vunpack.c.l.b16 %v1174
        %v1311 = vunpack.c.l.b16 %v1175
        %v1312 = vunpack.c.l.b16 %v1176
        %v1313 = vunpack.c.l.b16 %v1177
        %v1314 = vunpack.c.h.b16 %v1174
        %v1315 = vunpack.c.h.b16 %v1175
        %v1316 = vunpack.c.h.b16 %v1176
        %v1317 = vunpack.c.h.b16 %v1177
        %v1318 = vunpack.c.l.b16 %v1178
        %v1319 = vunpack.c.l.b16 %v1179
        %v1320 = vunpack.c.l.b16 %v1180
        %v1321 = vunpack.c.l.b16 %v1181
        %v1322 = vunpack.c.h.b16 %v1178
        %v1323 = vunpack.c.h.b16 %v1179
        %v1324 = vunpack.c.h.b16 %v1180
        %v1325 = vunpack.c.h.b16 %v1181
        %v1326 = vunpack.c.l.b16 %v1182
        %v1327 = vunpack.c.l.b16 %v1183
        %v1328 = vunpack.c.l.b16 %v1184
        %v1329 = vunpack.c.l.b16 %v1185
        %v1330 = vunpack.c.h.b16 %v1182
        %v1331 = vunpack.c.h.b16 %v1183
        %v1332 = vunpack.c.h.b16 %v1184
        %v1333 = vunpack.c.h.b16 %v1185
        %v1334 = vunpack.c.l.b16 %v1186
        %v1335 = vunpack.c.l.b16 %v1187
        %v1336 = vunpack.c.l.b16 %v1188
        %v1337 = vunpack.c.l.b16 %v1189
        %v1338 = vunpack.c.h.b16 %v1186
        %v1339 = vunpack.c.h.b16 %v1187
        %v1340 = vunpack.c.h.b16 %v1188
        %v1341 = vunpack.c.h.b16 %v1189
        %v1342 = vunpack.c.l.b16 %v1190
        %v1343 = vunpack.c.l.b16 %v1191
        %v1344 = vunpack.c.l.b16 %v1192
        %v1345 = vunpack.c.l.b16 %v1193
        %v1346 = vunpack.c.h.b16 %v1190
        %v1347 = vunpack.c.h.b16 %v1191
        %v1348 = vunpack.c.h.b16 %v1192
        %v1349 = vunpack.c.h.b16 %v1193
        %v1350 = vunpack.c.l.b16 %v1194
        %v1351 = vunpack.c.l.b16 %v1195
        %v1352 = vunpack.c.l.b16 %v1196
        %v1353 = vunpack.c.l.b16 %v1197
        %v1354 = vunpack.c.h.b16 %v1194
        %v1355 = vunpack.c.h.b16 %v1195
        %v1356 = vunpack.c.h.b16 %v1196
        %v1357 = vunpack.c.h.b16 %v1197
        %v1358 = vunpack.c.l.b16 %v1198
        %v1359 = vunpack.c.l.b16 %v1199
        %v1360 = vunpack.c.l.b16 %v1200
        %v1361 = vunpack.c.l.b16 %v1201
        %v1362 = vunpack.c.h.b16 %v1198
        %v1363 = vunpack.c.h.b16 %v1199
        %v1364 = vunpack.c.h.b16 %v1200
        %v1365 = vunpack.c.h.b16 %v1201
        %v1366 = vunpack.c.l.b16 %v1202
        %v1367 = vunpack.c.l.b16 %v1203
        %v1368 = vunpack.c.l.b16 %v1204
        %v1369 = vunpack.c.l.b16 %v1205
        %v1370 = vunpack.c.h.b16 %v1202
        %v1371 = vunpack.c.h.b16 %v1203
        %v1372 = vunpack.c.h.b16 %v1204
        %v1373 = vunpack.c.h.b16 %v1205
        %v1374 = vunpack.c.l.b16 %v1206
        %v1375 = vunpack.c.l.b16 %v1207
        %v1376 = vunpack.c.l.b16 %v1208
        %v1377 = vunpack.c.l.b16 %v1209
        %v1378 = vunpack.c.h.b16 %v1206
        %v1379 = vunpack.c.h.b16 %v1207
        %v1380 = vunpack.c.h.b16 %v1208
        %v1381 = vunpack.c.h.b16 %v1209
        %v1382 = vunpack.c.l.b16 %v1210
        %v1383 = vunpack.c.l.b16 %v1211
        %v1384 = vunpack.c.l.b16 %v1212
        %v1385 = vunpack.c.l.b16 %v1213
        %v1386 = vunpack.c.h.b16 %v1210
        %v1387 = vunpack.c.h.b16 %v1211
        %v1388 = vunpack.c.h.b16 %v1212
        %v1389 = vunpack.c.h.b16 %v1213
        %v1390 = vunpack.c.l.b16 %v1214
        %v1391 = vunpack.c.l.b16 %v1215
        %v1392 = vunpack.c.l.b16 %v1216
        %v1393 = vunpack.c.l.b16 %v1217
        %v1394 = vunpack.c.h.b16 %v1214
        %v1395 = vunpack.c.h.b16 %v1215
        %v1396 = vunpack.c.h.b16 %v1216
        %v1397 = vunpack.c.h.b16 %v1217
        %v1398 = vunpack.c.l.b16 %v1218
        %v1399 = vunpack.c.l.b16 %v1219
        %v1400 = vunpack.c.l.b16 %v1220
        %v1401 = vunpack.c.l.b16 %v1221
        %v1402 = vunpack.c.h.b16 %v1218
        %v1403 = vunpack.c.h.b16 %v1219
        %v1404 = vunpack.c.h.b16 %v1220
        %v1405 = vunpack.c.h.b16 %v1221
        %v1406 = vunpack.c.l.b16 %v1222
        %v1407 = vunpack.c.l.b16 %v1223
        %v1408 = vunpack.c.l.b16 %v1224
        %v1409 = vunpack.c.l.b16 %v1225
        %v1410 = vunpack.c.h.b16 %v1222
        %v1411 = vunpack.c.h.b16 %v1223
        %v1412 = vunpack.c.h.b16 %v1224
        %v1413 = vunpack.c.h.b16 %v1225
        %v1414 = vunpack.c.l.b16 %v1226
        %v1415 = vunpack.c.l.b16 %v1227
        %v1416 = vunpack.c.l.b16 %v1228
        %v1417 = vunpack.c.l.b16 %v1229
        %v1418 = vunpack.c.h.b16 %v1226
        %v1419 = vunpack.c.h.b16 %v1227
        %v1420 = vunpack.c.h.b16 %v1228
        %v1421 = vunpack.c.h.b16 %v1229
        %v1422 = vpack.c.b16 %v1295, %v1294
        %v1423 = vpack.c.b16 %v1297, %v1296
        %v1424 = vpack.c.b16 %v1299, %v1298
        %v1425 = vpack.c.b16 %v1301, %v1300
        %v1426 = vpack.c.b16 %v1303, %v1302
        %v1427 = vpack.c.b16 %v1305, %v1304
        %v1428 = vpack.c.b16 %v1307, %v1306
        %v1429 = vpack.c.b16 %v1309, %v1308
        %v1430 = vpack.c.b16 %v1311, %v1310
        %v1431 = vpack.c.b16 %v1313, %v1312
        %v1432 = vpack.c.b16 %v1315, %v1314
        %v1433 = vpack.c.b16 %v1317, %v1316
        %v1434 = vpack.c.b16 %v1319, %v1318
        %v1435 = vpack.c.b16 %v1321, %v1320
        %v1436 = vpack.c.b16 %v1323, %v1322
        %v1437 = vpack.c.b16 %v1325, %v1324
        %v1438 = vpack.c.b16 %v1327, %v1326
        %v1439 = vpack.c.b16 %v1329, %v1328
        %v1440 = vpack.c.b16 %v1331, %v1330
        %v1441 = vpack.c.b16 %v1333, %v1332
        %v1442 = vpack.c.b16 %v1335, %v1334
        %v1443 = vpack.c.b16 %v1337, %v1336
        %v1444 = vpack.c.b16 %v1339, %v1338
        %v1445 = vpack.c.b16 %v1341, %v1340
        %v1446 = vpack.c.b16 %v1343, %v1342
        %v1447 = vpack.c.b16 %v1345, %v1344
        %v1448 = vpack.c.b16 %v1347, %v1346
        %v1449 = vpack.c.b16 %v1349, %v1348
        %v1450 = vpack.c.b16 %v1351, %v1350
        %v1451 = vpack.c.b16 %v1353, %v1352
        %v1452 = vpack.c.b16 %v1355, %v1354
        %v1453 = vpack.c.b16 %v1357, %v1356
        %v1454 = vpack.c.b16 %v1359, %v1358
        %v1455 = vpack.c.b16 %v1361, %v1360
        %v1456 = vpack.c.b16 %v1363, %v1362
        %v1457 = vpack.c.b16 %v1365, %v1364
        %v1458 = vpack.c.b16 %v1367, %v1366
        %v1459 = vpack.c.b16 %v1369, %v1368
        %v1460 = vpack.c.b16 %v1371, %v1370
        %v1461 = vpack.c.b16 %v1373, %v1372
        %v1462 = vpack.c.b16 %v1375, %v1374
        %v1463 = vpack.c.b16 %v1377, %v1376
        %v1464 = vpack.c.b16 %v1379, %v1378
        %v1465 = vpack.c.b16 %v1381, %v1380
        %v1466 = vpack.c.b16 %v1383, %v1382
        %v1467 = vpack.c.b16 %v1385, %v1384
        %v1468 = vpack.c.b16 %v1387, %v1386
        %v1469 = vpack.c.b16 %v1389, %v1388
        %v1470 = vpack.c.b16 %v1391, %v1390
        %v1471 = vpack.c.b16 %v1393, %v1392
        %v1472 = vpack.c.b16 %v1395, %v1394
        %v1473 = vpack.c.b16 %v1397, %v1396
        %v1474 = vpack.c.b16 %v1399, %v1398
        %v1475 = vpack.c.b16 %v1401, %v1400
        %v1476 = vpack.c.b16 %v1403, %v1402
        %v1477 = vpack.c.b16 %v1405, %v1404
        %v1478 = vpack.c.b16 %v1407, %v1406
        %v1479 = vpack.c.b16 %v1409, %v1408
        %v1480 = vpack.c.b16 %v1411, %v1410
        %v1481 = vpack.c.b16 %v1413, %v1412
        %v1482 = vpack.c.b16 %v1415, %v1414
        %v1483 = vpack.c.b16 %v1417, %v1416
        %v1484 = vpack.c.b16 %v1419, %v1418
        %v1485 = vpack.c.b16 %v1421, %v1420
        %1550 = vst [vmem:[%s199] sm:$0xff] %v1422
        %1551 = vst [vmem:[%s199 + $0x8] sm:$0xff] %v1423
        %1552 = vst [vmem:[%s199 + $0x10] sm:$0xff] %v1424
        %1553 = vst [vmem:[%s199 + $0x18] sm:$0xff] %v1425
        %1554 = vst [vmem:[%s199 + $0x20] sm:$0xff] %v1426
        %1555 = vst [vmem:[%s199 + $0x28] sm:$0xff] %v1427
        %1556 = vst [vmem:[%s199 + $0x30] sm:$0xff] %v1428
        %1557 = vst [vmem:[%s199 + $0x38] sm:$0xff] %v1429
        %1558 = vst [vmem:[%s199 + $0x40] sm:$0xff] %v1430
        %1559 = vst [vmem:[%s199 + $0x48] sm:$0xff] %v1431
        %1560 = vst [vmem:[%s199 + $0x50] sm:$0xff] %v1432
        %1561 = vst [vmem:[%s199 + $0x58] sm:$0xff] %v1433
        %1562 = vst [vmem:[%s199 + $0x60] sm:$0xff] %v1434
        %1563 = vst [vmem:[%s199 + $0x68] sm:$0xff] %v1435
        %1564 = vst [vmem:[%s199 + $0x70] sm:$0xff] %v1436
        %1565 = vst [vmem:[%s199 + $0x78] sm:$0xff] %v1437
        %1566 = vst [vmem:[%s199 + $0x80] sm:$0xff] %v1438
        %1567 = vst [vmem:[%s199 + $0x88] sm:$0xff] %v1439
        %1568 = vst [vmem:[%s199 + $0x90] sm:$0xff] %v1440
        %1569 = vst [vmem:[%s199 + $0x98] sm:$0xff] %v1441
        %1570 = vst [vmem:[%s199 + $0xa0] sm:$0xff] %v1442
        %1571 = vst [vmem:[%s199 + $0xa8] sm:$0xff] %v1443
        %1572 = vst [vmem:[%s199 + $0xb0] sm:$0xff] %v1444
        %1573 = vst [vmem:[%s199 + $0xb8] sm:$0xff] %v1445
        %1574 = vst [vmem:[%s199 + $0xc0] sm:$0xff] %v1446
        %1575 = vst [vmem:[%s199 + $0xc8] sm:$0xff] %v1447
        %1576 = vst [vmem:[%s199 + $0xd0] sm:$0xff] %v1448
        %1577 = vst [vmem:[%s199 + $0xd8] sm:$0xff] %v1449
        %1578 = vst [vmem:[%s199 + $0xe0] sm:$0xff] %v1450
        %1579 = vst [vmem:[%s199 + $0xe8] sm:$0xff] %v1451
        %1580 = vst [vmem:[%s199 + $0xf0] sm:$0xff] %v1452
        %1581 = vst [vmem:[%s199 + $0xf8] sm:$0xff] %v1453
        %1582 = vst [vmem:[%s199 + $0x100] sm:$0xff] %v1454
        %1583 = vst [vmem:[%s199 + $0x108] sm:$0xff] %v1455
        %1584 = vst [vmem:[%s199 + $0x110] sm:$0xff] %v1456
        %1585 = vst [vmem:[%s199 + $0x118] sm:$0xff] %v1457
        %1586 = vst [vmem:[%s199 + $0x120] sm:$0xff] %v1458
        %1587 = vst [vmem:[%s199 + $0x128] sm:$0xff] %v1459
        %1588 = vst [vmem:[%s199 + $0x130] sm:$0xff] %v1460
        %1589 = vst [vmem:[%s199 + $0x138] sm:$0xff] %v1461
        %1590 = vst [vmem:[%s199 + $0x140] sm:$0xff] %v1462
        %1591 = vst [vmem:[%s199 + $0x148] sm:$0xff] %v1463
        %1592 = vst [vmem:[%s199 + $0x150] sm:$0xff] %v1464
        %1593 = vst [vmem:[%s199 + $0x158] sm:$0xff] %v1465
        %1594 = vst [vmem:[%s199 + $0x160] sm:$0xff] %v1466
        %1595 = vst [vmem:[%s199 + $0x168] sm:$0xff] %v1467
        %1596 = vst [vmem:[%s199 + $0x170] sm:$0xff] %v1468
        %1597 = vst [vmem:[%s199 + $0x178] sm:$0xff] %v1469
        %1598 = vst [vmem:[%s199 + $0x180] sm:$0xff] %v1470
        %1599 = vst [vmem:[%s199 + $0x188] sm:$0xff] %v1471
        %1600 = vst [vmem:[%s199 + $0x190] sm:$0xff] %v1472
        %1601 = vst [vmem:[%s199 + $0x198] sm:$0xff] %v1473
        %1602 = vst [vmem:[%s199 + $0x1a0] sm:$0xff] %v1474
        %1603 = vst [vmem:[%s199 + $0x1a8] sm:$0xff] %v1475
        %1604 = vst [vmem:[%s199 + $0x1b0] sm:$0xff] %v1476
        %1605 = vst [vmem:[%s199 + $0x1b8] sm:$0xff] %v1477
        %1606 = vst [vmem:[%s199 + $0x1c0] sm:$0xff] %v1478
        %1607 = vst [vmem:[%s199 + $0x1c8] sm:$0xff] %v1479
        %1608 = vst [vmem:[%s199 + $0x1d0] sm:$0xff] %v1480
        %1609 = vst [vmem:[%s199 + $0x1d8] sm:$0xff] %v1481
        %1610 = vst [vmem:[%s199 + $0x1e0] sm:$0xff] %v1482
        %1611 = vst [vmem:[%s199 + $0x1e8] sm:$0xff] %v1483
        %1612 = vst [vmem:[%s199 + $0x1f0] sm:$0xff] %v1484
        %1613 = vst [vmem:[%s199 + $0x1f8] sm:$0xff] %v1485
        %s1614 = sand.u32 %s94, 1
        %s1615 = scalar_lea.sflag [#allocation4], %s1614
        %s1616 = sand.u32 %s94, 1
        %s1617 = smul.addr %s1616, 512
        %s1618 = scalar_lea.vmem [#allocation7], %s1617
        // Predicated region
        $region37: #{tpu_custom_call.1} parent=27 // pred_check
          %p1619 = pneg %p104
        $region38: #{tpu_custom_call.1} parent=27 // pred_check_branch
          %1621 = sbr.rel (%p1619) target = $region40
        $region39: #{tpu_custom_call.1} parent=27 // pred_region
          %s1622 = smul.u32 32, %s24
          %s1623 = smul.u32 4, %s25
          %s1625 = ssub.s32 8192, 8192
          %1626 = vsyncadd %s1615, %s1625
          %s1627 = smul.addr %s1622, 8
          %s1628 = sadd.s32 %s1623, %s1627
          %s1629 = smul.addr %s1628, 64
          %s1630 = scalar_lea.hbm %s2, %s1629
          %s1631 = sshll.u32 %s1618, 4
          %s1632 = int_to_ptr.vmem [resolvable:$true] %s1631
          %1637 = dma.vmem_to_hbm [thread:$0]  %s1632, 8192, %s1630, %s1615, 256, 512, 16
        $region40: #{tpu_custom_call.1} parent=27 // pred_fallthru
          _
      $region28: #{tpu_custom_call.1} parent=5 // pred_fallthru
        _
      %p1638 = scmp.le.s32.totalorder 2, %s15
      // Predicated region
      $region41: #{tpu_custom_call.1} parent=5 // pred_check
        %p1639 = pneg %p1638
      $region42: #{tpu_custom_call.1} parent=5 // pred_check_branch
        %1641 = sbr.rel (%p1639) target = $region44
      $region43: #{tpu_custom_call.1} parent=5 // pred_region
        %s1642 = ssub.s32 %s15, 2
        // Predicated region
        $region45: #{tpu_custom_call.1} parent=43 // pred_check
          %p1643 = pneg %p110
        $region46: #{tpu_custom_call.1} parent=43 // pred_check_branch
          %1645 = sbr.rel (%p1643) target = $region48
        $region47: #{tpu_custom_call.1} parent=43 // pred_region
          %s1646 = sand.u32 %s95, 1
          %s1647 = scalar_lea.sflag [#allocation4], %s1646
          %s1648 = sand.u32 %s95, 1
          %s1649 = smul.addr %s1648, 512
          %s1650 = scalar_lea.vmem [#allocation7], %s1649
          %1651 = dma.done %s1647, 8192
        $region48: #{tpu_custom_call.1} parent=43 // pred_fallthru
          _
      $region44: #{tpu_custom_call.1} parent=5 // pred_fallthru
        _
    $region6: #{tpu_custom_call.1} parent=1 // loop_footer
      %s19 = sadd.s32 1, %s15
    $region7: #{tpu_custom_call.1} parent=1 // loop_footer_branch
      %14 = sbr.rel target = $region3
    $region8: #{tpu_custom_call.1} parent=1 // loop_exit
      _
    %1652 = vsyncpa [#allocation3], 1
    %s1653 = scalar_lea.sflag [#allocation3], 1
    %1654 = vsyncpa %s1653, 1
    %1655 = vsyncpa [#allocation6], 1
    %s1656 = scalar_lea.sflag [#allocation6], 1
    %1657 = vsyncpa %s1656, 1
    %1658 = vsyncpa [#allocation4], 1
    %s1659 = scalar_lea.sflag [#allocation4], 1
    %1660 = vsyncpa %s1659, 1

</llo_original>
